<compile_context>
chip_gen: v7x
topology: tpu7x:2x2x1
jax: 0.10.0
libtpu: 0.0.40
codegen_flags: <defaults>
</compile_context>

<pallas_src>
import functools

import jax
import jax.numpy as jnp
from jax.experimental import pallas as pl
from jax.experimental.pallas import tpu as pltpu

LEAKY_SLOPE = 0.2
PN_EPS = 1e-8
HIGH = jax.lax.Precision.HIGHEST          # pure-JAX reference only
VMEM_LIMIT = 64 * 1024 * 1024             # raised scoped-VMEM limit


# ---------------------------------------------------------------------------
# In-kernel helpers
# ---------------------------------------------------------------------------
def _leaky(x):
    return jnp.where(x > 0, x, LEAKY_SLOPE * x)


def _pixelnorm_lastaxis(x):
    # PixelNorm over the channel axis (channels are the last axis here).
    return x * jax.lax.rsqrt(jnp.mean(x * x, axis=-1, keepdims=True) + PN_EPS)


def _zero_border(pad_ref, H, W):
    """Zero only the 1-px border of a (H+2, W+2, C) pad scratch.

    Done every grid step (cheap: 4 thin stores) so it is correct regardless
    of how the batch grid axis is partitioned across TensorCores; the
    interior is fully overwritten every step.
    """
    C = pad_ref.shape[-1]
    z_row = jnp.zeros((1, W + 2, C), jnp.float32)
    z_col = jnp.zeros((H + 2, 1, C), jnp.float32)
    pad_ref[0:1, :, :] = z_row
    pad_ref[H + 1:H + 2, :, :] = z_row
    pad_ref[:, 0:1, :] = z_col
    pad_ref[:, W + 1:W + 2, :] = z_col


def _conv3x3(pad_ref, w_ref, b_ref, H, W, Cin, Cout):
    """3x3 pad-1 stride-1 conv as 9 accumulated dots (no concat, no patches
    buffer).  pad_ref: (H+2, W+2, Cin) f32 VMEM; w_ref: (9, Cin, Cout) bf16;
    b_ref: (1, Cout) f32.  Returns (H*W, Cout) f32 (spatial-major)."""
    acc = jnp.zeros((H * W, Cout), jnp.float32)
    for t in range(9):
        kh, kw = divmod(t, 3)
        tap = pad_ref[kh:kh + H, kw:kw + W, :].reshape(H * W, Cin)
        acc = acc + jnp.dot(tap.astype(jnp.bfloat16), w_ref[t],
                            preferred_element_type=jnp.float32)
    return acc + b_ref[...]


# ---------------------------------------------------------------------------
# Kernels
# ---------------------------------------------------------------------------
def _initial_kernel(z_ref, wt_ref, bt_ref, wc_ref, bc_ref, o_ref, xpad_ref, *,
                    C):
    # Whole initial block for one batch element:
    #   PixelNorm(z) -> ConvTranspose2d(z,C,4,1,0) -> LeakyReLU
    #   -> WSConv2d 3x3 -> LeakyReLU -> PixelNorm
    # z_ref: (1, 1, Z); wt_ref: (16, Z, C) bf16; bt_ref: (1, C);
    # wc_ref: (9, C, C) bf16; bc_ref: (1, C); o_ref: (1, C, 16);
    # xpad_ref: (6, 6, C) f32 scratch.
    _zero_border(xpad_ref, 4, 4)

    z = z_ref[0]                                              # (1, Z)
    z = z * jax.lax.rsqrt(jnp.mean(z * z, axis=1, keepdims=True) + PN_EPS)
    zb = z.astype(jnp.bfloat16)

    # ConvTranspose2d on a 1x1 input: one tiny matmul per output position,
    # written (post-LeakyReLU) directly into the padded conv scratch.
    for s in range(16):
        i, j = divmod(s, 4)
        v = jnp.dot(zb, wt_ref[s],
                    preferred_element_type=jnp.float32) + bt_ref[...]
        xpad_ref[1 + i:2 + i, 1 + j:2 + j, :] = _leaky(v).reshape(1, 1, C)

    y = _conv3x3(xpad_ref, wc_ref, bc_ref, 4, 4, C, C)        # (16, C)
    y = _pixelnorm_lastaxis(_leaky(y))
    o_ref[...] = jnp.transpose(y)[None]                       # (1, C, 16)


def _rgb1x1_kernel(x_ref, w_ref, b_ref, o_ref):
    # steps == 0 toRGB: a single channel-major matmul, no staging scratch.
    # x_ref: (1, C, S); w_ref: (IC, C) bf16; b_ref: (IC, 1); o_ref: (1, IC, S)
    y = jnp.dot(w_ref[...], x_ref[0].astype(jnp.bfloat16),
                preferred_element_type=jnp.float32) + b_ref[...]
    o_ref[...] = y[None]


def _step_kernel(*refs, H, W, Cin, Cmid, Cout, IC, fuse_rgb):
    # One fused progressive step for one batch element:
    #   conv3x3 -> LeakyReLU -> PixelNorm -> conv3x3 -> LeakyReLU -> PixelNorm
    # with the intermediate kept in VMEM scratch; on the final step the two
    # toRGB 1x1 convs + fade_in + tanh are fused in as well.
    if fuse_rgb:
        (x_ref, w1_ref, b1_ref, w2_ref, b2_ref,
         wr1_ref, br1_ref, wr2_ref, br2_ref, alpha_ref,
         o_ref, xpad_ref, hpad_ref) = refs
    else:
        (x_ref, w1_ref, b1_ref, w2_ref, b2_ref,
         o_ref, xpad_ref, hpad_ref) = refs

    _zero_border(xpad_ref, H, W)
    _zero_border(hpad_ref, H, W)

    # Input arrives channel-major (lane-dense load); transpose once and stage
    # the interior of the padded conv buffer.
    x_cm = x_ref[0]                                           # (Cin, H*W)
    x_sm = jnp.transpose(x_cm)                                # (H*W, Cin)
    xpad_ref[1:H + 1, 1:W + 1, :] = x_sm.reshape(H, W, Cin)

    # conv1 3x3 + LeakyReLU + PixelNorm (intermediate stays in VMEM)
    h = _conv3x3(xpad_ref, w1_ref, b1_ref, H, W, Cin, Cmid)   # (H*W, Cmid)
    h = _pixelnorm_lastaxis(_leaky(h))
    hpad_ref[1:H + 1, 1:W + 1, :] = h.reshape(H, W, Cmid)

    # conv2 3x3 + LeakyReLU + PixelNorm
    y = _conv3x3(hpad_ref, w2_ref, b2_ref, H, W, Cmid, Cout)  # (H*W, Cout)
    y = _pixelnorm_lastaxis(_leaky(y))
    y_cm = jnp.transpose(y)                                   # (Cout, H*W)

    if not fuse_rgb:
        o_ref[...] = y_cm[None]                               # lane-dense
    else:
        a = alpha_ref[0]                                      # SMEM scalar
        f_up = jnp.dot(wr1_ref[...], x_cm.astype(jnp.bfloat16),
                       preferred_element_type=jnp.float32) + br1_ref[...]
        f_out = jnp.dot(wr2_ref[...], y_cm.astype(jnp.bfloat16),
                        preferred_element_type=jnp.float32) + br2_ref[...]
        o_ref[...] = jnp.tanh(a * f_out + (1.0 - a) * f_up)[None]


# ---------------------------------------------------------------------------
# Pallas wrappers
# ---------------------------------------------------------------------------
def pallas_initial(z, wt, bt, wc, bc):
    # z: (N, 1, Z); wt: (16, Z, C) bf16; bt/bc: (1, C); wc: (9, C, C) bf16.
    N, _, Z = z.shape
    C = wt.shape[-1]
    kern = functools.partial(_initial_kernel, C=C)
    return pl.pallas_call(
        kern,
        out_shape=jax.ShapeDtypeStruct((N, C, 16), jnp.float32),
        grid=(N,),
        in_specs=[pl.BlockSpec((1, 1, Z), lambda n: (n, 0, 0)),
                  pl.BlockSpec((16, Z, C), lambda n: (0, 0, 0)),
                  pl.BlockSpec((1, C), lambda n: (0, 0)),
                  pl.BlockSpec((9, C, C), lambda n: (0, 0, 0)),
                  pl.BlockSpec((1, C), lambda n: (0, 0))],
        out_specs=pl.BlockSpec((1, C, 16), lambda n: (n, 0, 0)),
        scratch_shapes=[pltpu.VMEM((6, 6, C), jnp.float32)],
        compiler_params=pltpu.CompilerParams(
            dimension_semantics=("parallel",),
            vmem_limit_bytes=VMEM_LIMIT),
    )(z, wt, bt, wc, bc)


def pallas_rgb1x1(x, w, b):
    # x: (N, C, S) channel-major; w: (IC, C) bf16; b: (IC, 1) f32.
    N, C, S = x.shape
    IC = w.shape[0]
    return pl.pallas_call(
        _rgb1x1_kernel,
        out_shape=jax.ShapeDtypeStruct((N, IC, S), jnp.float32),
        grid=(N,),
        in_specs=[pl.BlockSpec((1, C, S), lambda n: (n, 0, 0)),
                  pl.BlockSpec((IC, C), lambda n: (0, 0)),
                  pl.BlockSpec((IC, 1), lambda n: (0, 0))],
        out_specs=pl.BlockSpec((1, IC, S), lambda n: (n, 0, 0)),
        compiler_params=pltpu.CompilerParams(
            dimension_semantics=("parallel",),
            vmem_limit_bytes=VMEM_LIMIT),
    )(x, w, b)


def pallas_step(x_up, hw, c1, c2, rgb=None, alpha=None):
    # x_up: (N, Cin, H*W) channel-major, already 2x nearest-upsampled.
    # c1/c2: {"w": (3,3,Ci,Co), "b": (1,Co)}.  rgb: optional (rgb_up, rgb_out)
    # 1x1-conv params for the final step (fade_in + tanh fused in-kernel).
    N, Cin, HW = x_up.shape
    H, W = hw
    assert H * W == HW
    Cmid = c1["w"].shape[-1]
    Cout = c2["w"].shape[-1]
    # bf16 weights (halves weight DMA / VMEM; MXU default precision is bf16
    # anyway).  TODO(synk): at C=512 also request pl.Buffered(1) on these.
    w1 = c1["w"].reshape(9, Cin, Cmid).astype(jnp.bfloat16)
    w2 = c2["w"].reshape(9, Cmid, Cout).astype(jnp.bfloat16)
    fuse_rgb = rgb is not None

    in_specs = [pl.BlockSpec((1, Cin, HW), lambda n: (n, 0, 0)),
                pl.BlockSpec((9, Cin, Cmid), lambda n: (0, 0, 0)),
                pl.BlockSpec((1, Cmid), lambda n: (0, 0)),
                pl.BlockSpec((9, Cmid, Cout), lambda n: (0, 0, 0)),
                pl.BlockSpec((1, Cout), lambda n: (0, 0))]
    args = [x_up, w1, c1["b"], w2, c2["b"]]

    if fuse_rgb:
        rgb_up, rgb_out = rgb
        IC = rgb_up["w"].shape[-1]
        wr1 = rgb_up["w"].reshape(Cin, IC).T.astype(jnp.bfloat16)   # (IC, Cin)
        wr2 = rgb_out["w"].reshape(Cout, IC).T.astype(jnp.bfloat16)  # (IC, Cout)
        br1 = rgb_up["b"].reshape(IC, 1)
        br2 = rgb_out["b"].reshape(IC, 1)
        alpha_arr = jnp.full((1,), alpha, jnp.float32)
        in_specs += [pl.BlockSpec((IC, Cin), lambda n: (0, 0)),
                     pl.BlockSpec((IC, 1), lambda n: (0, 0)),
                     pl.BlockSpec((IC, Cout), lambda n: (0, 0)),
                     pl.BlockSpec((IC, 1), lambda n: (0, 0)),
                     pl.BlockSpec(memory_space=pltpu.MemorySpace.SMEM)]
        args += [wr1, br1, wr2, br2, alpha_arr]
        OutC = IC
    else:
        IC = 0
        OutC = Cout

    kern = functools.partial(_step_kernel, H=H, W=W, Cin=Cin, Cmid=Cmid,
                             Cout=Cout, IC=IC, fuse_rgb=fuse_rgb)
    # TODO(synk): for 128x128+ resolutions add an output-row tile grid axis
    # (1-row halo) so the working set stays within v7x's scoped VMEM.
    return pl.pallas_call(
        kern,
        out_shape=jax.ShapeDtypeStruct((N, OutC, HW), jnp.float32),
        grid=(N,),
        in_specs=in_specs,
        out_specs=pl.BlockSpec((1, OutC, HW), lambda n: (n, 0, 0)),
        scratch_shapes=[pltpu.VMEM((H + 2, W + 2, Cin), jnp.float32),
                        pltpu.VMEM((H + 2, W + 2, Cmid), jnp.float32)],
        compiler_params=pltpu.CompilerParams(
            dimension_semantics=("parallel",),
            vmem_limit_bytes=VMEM_LIMIT),
    )(*args)


# ---------------------------------------------------------------------------
# Parameters (deterministic synthetic init, shapes per the torch __init__)
# ---------------------------------------------------------------------------
FACTORS = [1, 1, 1, 1, 1 / 2, 1 / 4, 1 / 8, 1 / 16, 1 / 32]


def _ws_conv_params(key, cin, cout, k):
    kw_, kb_ = jax.random.split(key)
    w = jax.random.normal(kw_, (k, k, cin, cout), jnp.float32)
    scale = (2.0 / (cin * k * k)) ** 0.5     # WSConv2d scale folded into w
    b = jax.random.normal(kb_, (cout,), jnp.float32) * 0.1
    return {"w": w * scale, "b": b.reshape(1, cout)}


def make_generator_params(key, z_dim, in_channels, img_channels=3):
    keys = iter(jax.random.split(key, 64))
    C = in_channels
    params = {}
    # initial ConvTranspose2d(z_dim, C, 4, 1, 0): weight (z_dim, 4, 4, C)
    params["convt_w"] = jax.random.normal(next(keys), (z_dim, 4, 4, C),
                                          jnp.float32) * 0.1
    params["convt_b"] = jax.random.normal(next(keys), (C,), jnp.float32) * 0.1
    # initial WSConv2d(C, C, 3, 1, 1)
    params["init_conv"] = _ws_conv_params(next(keys), C, C, 3)
    # rgb layers and progressive blocks
    rgb = [_ws_conv_params(next(keys), C, img_channels, 1)]
    blocks = []
    for i in range(len(FACTORS) - 1):
        cin = int(C * FACTORS[i])
        cout = int(C * FACTORS[i + 1])
        blocks.append((_ws_conv_params(next(keys), cin, cout, 3),
                       _ws_conv_params(next(keys), cout, cout, 3)))
        rgb.append(_ws_conv_params(next(keys), cout, img_channels, 1))
    params["blocks"] = blocks
    params["rgb"] = rgb
    return params


# ---------------------------------------------------------------------------
# Generator forward (Pallas).  Returns NCHW (N, img_channels, H, W).
# ---------------------------------------------------------------------------
def generator_forward(params, X, alpha, steps):
    # X: (N, z_dim, 1, 1) (torch NCHW latent convention)
    N = X.shape[0]
    z = X.reshape(N, 1, -1).astype(jnp.float32)
    Z = z.shape[-1]
    C = params["init_conv"]["w"].shape[-1]

    # initial block: PixelNorm -> ConvT 4x4 -> LReLU -> 3x3 -> LReLU -> PN
    wt = jnp.transpose(params["convt_w"], (1, 2, 0, 3)).reshape(16, Z, C)
    wt = wt.astype(jnp.bfloat16)
    bt = params["convt_b"].reshape(1, C)
    wc = params["init_conv"]["w"].reshape(9, C, C).astype(jnp.bfloat16)
    bc = params["init_conv"]["b"]
    out = pallas_initial(z, wt, bt, wc, bc)          # (N, C, 16) channel-major
    H = W = 4

    if steps == 0:
        p = params["rgb"][0]
        IC = p["w"].shape[-1]
        w = p["w"].reshape(C, IC).T.astype(jnp.bfloat16)
        b = p["b"].reshape(IC, 1)
        y = pallas_rgb1x1(out, w, b)                 # (N, IC, 16)
        return y.reshape(N, IC, H, W)

    for step in range(steps):
        Cin = out.shape[1]
        # 2x nearest-neighbour upsample (cheap XLA data movement between the
        # fused per-step kernels).
        # TODO(synk): fuse this into _step_kernel's padded staging.
        up = out.reshape(N, Cin, H, W)
        up = jnp.repeat(jnp.repeat(up, 2, axis=2), 2, axis=3)
        H, W = 2 * H, 2 * W
        up = up.reshape(N, Cin, H * W)
        c1, c2 = params["blocks"][step]
        if step == steps - 1:
            out = pallas_step(up, (H, W), c1, c2,
                              rgb=(params["rgb"][steps - 1],
                                   params["rgb"][steps]),
                              alpha=alpha)
        else:
            out = pallas_step(up, (H, W), c1, c2)

    IC = out.shape[1]
    return out.reshape(N, IC, H, W)


# ---------------------------------------------------------------------------
# Pure-JAX reference (f32 HIGHEST precision, NHWC) for the correctness check
# ---------------------------------------------------------------------------
def _ref_pixelnorm(x):
    return x * jax.lax.rsqrt(jnp.mean(x * x, axis=-1, keepdims=True) + PN_EPS)


def _ref_leaky(x):
    return jnp.where(x > 0, x, LEAKY_SLOPE * x)


def _ref_conv(x, w, b, padding):
    y = jax.lax.conv_general_dilated(
        x, w, (1, 1), [(padding, padding), (padding, padding)],
        dimension_numbers=("NHWC", "HWIO", "NHWC"), precision=HIGH)
    return y + b.reshape(1, 1, 1, -1)


def ref_forward(params, X, alpha, steps):
    N = X.shape[0]
    x2d = X.reshape(N, -1)
    x2d = x2d * jax.lax.rsqrt(jnp.mean(x2d * x2d, axis=1, keepdims=True)
                              + PN_EPS)
    C = params["init_conv"]["w"].shape[-1]
    Z = x2d.shape[-1]
    out = jnp.dot(x2d, params["convt_w"].reshape(Z, 16 * C), precision=HIGH)
    out = out.reshape(N, 4, 4, C) + params["convt_b"].reshape(1, 1, 1, C)
    out = _ref_leaky(out)
    p = params["init_conv"]
    out = _ref_pixelnorm(_ref_leaky(_ref_conv(out, p["w"], p["b"], 1)))
    if steps == 0:
        p = params["rgb"][0]
        return _ref_conv(out, p["w"], p["b"], 0)
    upscale = out
    for step in range(steps):
        upscale = jnp.repeat(jnp.repeat(out, 2, axis=1), 2, axis=2)
        c1, c2 = params["blocks"][step]
        h = _ref_pixelnorm(_ref_leaky(_ref_conv(upscale, c1["w"], c1["b"], 1)))
        out = _ref_pixelnorm(_ref_leaky(_ref_conv(h, c2["w"], c2["b"], 1)))
    p1, p2 = params["rgb"][steps - 1], params["rgb"][steps]
    f_up = _ref_conv(upscale, p1["w"], p1["b"], 0)
    f_out = _ref_conv(out, p2["w"], p2["b"], 0)
    return jnp.tanh(alpha * f_out + (1.0 - alpha) * f_up)


# ---------------------------------------------------------------------------
if __name__ == "__main__":
    key = jax.random.PRNGKey(0)
    kp, kx = jax.random.split(key)

    z_dim, in_channels, img_channels = 32, 32, 3
    params = make_generator_params(kp, z_dim, in_channels, img_channels)

    X = jax.random.normal(kx, (2, z_dim, 1, 1), jnp.float32)
    alpha, steps = 0.5, 2

    # steps == 2 (fused progressive steps + fade_in/tanh on the final step)
    y = generator_forward(params, X, alpha, steps)
    y = jax.block_until_ready(y)
    y_ref = jnp.transpose(ref_forward(params, X, alpha, steps), (0, 3, 1, 2))

    assert y.shape == (2, img_channels, 4 * 2 ** steps, 4 * 2 ** steps), y.shape
    assert bool(jnp.all(jnp.isfinite(y)))
    # Kernels run the MXU with bf16 operands (f32 accumulate); the reference
    # is f32 HIGHEST, so allow a loose tolerance (structural bugs would give
    # O(1) errors).
    err = float(jnp.max(jnp.abs(y - y_ref)))
    assert err < 1e-1, f"max abs error vs reference (steps=2): {err}"

    # steps == 0 (initial block + direct 1x1 toRGB path)
    y0 = jax.block_until_ready(generator_forward(params, X, 1.0, 0))
    y0_ref = jnp.transpose(ref_forward(params, X, 1.0, 0), (0, 3, 1, 2))
    assert y0.shape == (2, img_channels, 4, 4), y0.shape
    err0 = float(jnp.max(jnp.abs(y0 - y0_ref)))
    assert err0 < 1e-1, f"max abs error vs reference (steps=0): {err0}"

    print("KERNEL_OK")
</pallas_src>

<mosaic_0001>
module attributes {stable_mosaic.version = 11 : i64} {
  func.func @_initial_kernel(%arg0: i32, %arg1: memref<1x1x32xf32, #tpu.memory_space<vmem>>, %arg2: memref<16x32x32xbf16, #tpu.memory_space<vmem>>, %arg3: memref<1x32xf32, #tpu.memory_space<vmem>>, %arg4: memref<9x32x32xbf16, #tpu.memory_space<vmem>>, %arg5: memref<1x32xf32, #tpu.memory_space<vmem>>, %arg6: memref<1x32x16xf32, #tpu.memory_space<vmem>>, %arg7: memref<6x6x32xf32, #tpu.memory_space<vmem>>) attributes {dimension_semantics = [#tpu.dimension_semantics<parallel>], iteration_bounds = array<i64: 2>, scalar_prefetch = 0 : i64, scratch_operands = 1 : i64, tpu.core_type = #tpu.core_type<tc>, window_params = [{transform_indices = @transform_0, window_bounds = array<i64: 1, 1, 32>}, {pipeline_mode = #tpu.pipeline_mode<synchronous>, transform_indices = @transform_1, window_bounds = array<i64: 16, 32, 32>}, {pipeline_mode = #tpu.pipeline_mode<synchronous>, transform_indices = @transform_2, window_bounds = array<i64: 1, 32>}, {pipeline_mode = #tpu.pipeline_mode<synchronous>, transform_indices = @transform_3, window_bounds = array<i64: 9, 32, 32>}, {pipeline_mode = #tpu.pipeline_mode<synchronous>, transform_indices = @transform_4, window_bounds = array<i64: 1, 32>}, {transform_indices = @transform_5, window_bounds = array<i64: 1, 32, 16>}]} {
    %cst = arith.constant 0.000000e+00 : f32
    %0 = vector.broadcast %cst : f32 to vector<1x6x32xf32>
    %cst_0 = arith.constant 0.000000e+00 : f32
    %1 = vector.broadcast %cst_0 : f32 to vector<6x1x32xf32>
    %c0 = arith.constant 0 : index
    %c0_1 = arith.constant 0 : index
    %c0_2 = arith.constant 0 : index
    %2 = vector.load %arg7[%c0, %c0_1, %c0_2] : memref<6x6x32xf32, #tpu.memory_space<vmem>>, vector<1x6x32xf32>
    tpu.vector_store %arg7[%c0, %c0_1, %c0_2], %0 {strides = array<i32>} : memref<6x6x32xf32, #tpu.memory_space<vmem>>, vector<1x6x32xf32>,
    %c5 = arith.constant 5 : index
    %c0_3 = arith.constant 0 : index
    %c0_4 = arith.constant 0 : index
    %3 = vector.load %arg7[%c5, %c0_3, %c0_4] : memref<6x6x32xf32, #tpu.memory_space<vmem>>, vector<1x6x32xf32>
    tpu.vector_store %arg7[%c5, %c0_3, %c0_4], %0 {strides = array<i32>} : memref<6x6x32xf32, #tpu.memory_space<vmem>>, vector<1x6x32xf32>,
    %c0_5 = arith.constant 0 : index
    %c0_6 = arith.constant 0 : index
    %c0_7 = arith.constant 0 : index
    %4 = vector.load %arg7[%c0_5, %c0_6, %c0_7] : memref<6x6x32xf32, #tpu.memory_space<vmem>>, vector<6x1x32xf32>
    tpu.vector_store %arg7[%c0_5, %c0_6, %c0_7], %1 {strides = array<i32>} : memref<6x6x32xf32, #tpu.memory_space<vmem>>, vector<6x1x32xf32>,
    %c0_8 = arith.constant 0 : index
    %c5_9 = arith.constant 5 : index
    %c0_10 = arith.constant 0 : index
    %5 = vector.load %arg7[%c0_8, %c5_9, %c0_10] : memref<6x6x32xf32, #tpu.memory_space<vmem>>, vector<6x1x32xf32>
    tpu.vector_store %arg7[%c0_8, %c5_9, %c0_10], %1 {strides = array<i32>} : memref<6x6x32xf32, #tpu.memory_space<vmem>>, vector<6x1x32xf32>,
    %c0_11 = arith.constant 0 : index
    %c0_12 = arith.constant 0 : index
    %c0_13 = arith.constant 0 : index
    %6 = vector.load %arg1[%c0_11, %c0_12, %c0_13] : memref<1x1x32xf32, #tpu.memory_space<vmem>>, vector<1x1x32xf32>
    %7 = vector.shape_cast %6 : vector<1x1x32xf32> to vector<1x32xf32>
    %8 = arith.mulf %7, %7 : vector<1x32xf32>
    %cst_14 = arith.constant dense<0.000000e+00> : vector<1xf32>
    %9 = vector.multi_reduction <add>, %8, %cst_14 [1] : vector<1x32xf32> to vector<1xf32>
    %10 = vector.shape_cast %9 : vector<1xf32> to vector<1x1xf32>
    %cst_15 = arith.constant 3.200000e+01 : f32
    %11 = vector.broadcast %cst_15 : f32 to vector<1x1xf32>
    %12 = arith.divf %10, %11 : vector<1x1xf32>
    %cst_16 = arith.constant 9.99999993E-9 : f32
    %13 = vector.broadcast %cst_16 : f32 to vector<1x1xf32>
    %14 = arith.addf %12, %13 : vector<1x1xf32>
    %15 = math.rsqrt %14 : vector<1x1xf32>
    %16 = vector.broadcast %15 : vector<1x1xf32> to vector<1x32xf32>
    %17 = arith.mulf %7, %16 : vector<1x32xf32>
    %18 = arith.truncf %17 : vector<1x32xf32> to vector<1x32xbf16>
    %c0_17 = arith.constant 0 : index
    %c0_18 = arith.constant 0 : index
    %c0_19 = arith.constant 0 : index
    %19 = vector.load %arg2[%c0_17, %c0_18, %c0_19] : memref<16x32x32xbf16, #tpu.memory_space<vmem>>, vector<1x32x32xbf16>
    %20 = vector.shape_cast %19 : vector<1x32x32xbf16> to vector<32x32xbf16>
    %cst_20 = arith.constant dense<0.000000e+00> : vector<1x32xf32>
    %21 = tpu.matmul %18, %20, %cst_20 {dimension_numbers = #tpu.dot_dimension_numbers<[1], [0], [0], [1], [0, 0, 1, 1], [], []>} : vector<1x32xbf16>, vector<32x32xbf16>, vector<1x32xf32> -> vector<1x32xf32>
    %c0_21 = arith.constant 0 : index
    %c0_22 = arith.constant 0 : index
    %22 = vector.load %arg3[%c0_21, %c0_22] : memref<1x32xf32, #tpu.memory_space<vmem>>, vector<1x32xf32>
    %23 = arith.addf %21, %22 : vector<1x32xf32>
    %cst_23 = arith.constant 0.000000e+00 : f32
    %24 = vector.broadcast %cst_23 : f32 to vector<1x32xf32>
    %25 = arith.cmpf ogt, %23, %24 : vector<1x32xf32>
    %cst_24 = arith.constant 2.000000e-01 : f32
    %26 = vector.broadcast %cst_24 : f32 to vector<1x32xf32>
    %27 = arith.mulf %26, %23 : vector<1x32xf32>
    %28 = arith.select %25, %23, %27 : vector<1x32xi1>, vector<1x32xf32>
    %29 = vector.shape_cast %28 : vector<1x32xf32> to vector<1x1x32xf32>
    %c1 = arith.constant 1 : index
    %c1_25 = arith.constant 1 : index
    %c0_26 = arith.constant 0 : index
    %30 = vector.load %arg7[%c1, %c1_25, %c0_26] : memref<6x6x32xf32, #tpu.memory_space<vmem>>, vector<1x1x32xf32>
    tpu.vector_store %arg7[%c1, %c1_25, %c0_26], %29 {strides = array<i32>} : memref<6x6x32xf32, #tpu.memory_space<vmem>>, vector<1x1x32xf32>,
    %c1_27 = arith.constant 1 : index
    %c0_28 = arith.constant 0 : index
    %c0_29 = arith.constant 0 : index
    %31 = vector.load %arg2[%c1_27, %c0_28, %c0_29] : memref<16x32x32xbf16, #tpu.memory_space<vmem>>, vector<1x32x32xbf16>
    %32 = vector.shape_cast %31 : vector<1x32x32xbf16> to vector<32x32xbf16>
    %cst_30 = arith.constant dense<0.000000e+00> : vector<1x32xf32>
    %33 = tpu.matmul %18, %32, %cst_30 {dimension_numbers = #tpu.dot_dimension_numbers<[1], [0], [0], [1], [0, 0, 1, 1], [], []>} : vector<1x32xbf16>, vector<32x32xbf16>, vector<1x32xf32> -> vector<1x32xf32>
    %c0_31 = arith.constant 0 : index
    %c0_32 = arith.constant 0 : index
    %34 = vector.load %arg3[%c0_31, %c0_32] : memref<1x32xf32, #tpu.memory_space<vmem>>, vector<1x32xf32>
    %35 = arith.addf %33, %34 : vector<1x32xf32>
    %cst_33 = arith.constant 0.000000e+00 : f32
    %36 = vector.broadcast %cst_33 : f32 to vector<1x32xf32>
    %37 = arith.cmpf ogt, %35, %36 : vector<1x32xf32>
    %cst_34 = arith.constant 2.000000e-01 : f32
    %38 = vector.broadcast %cst_34 : f32 to vector<1x32xf32>
    %39 = arith.mulf %38, %35 : vector<1x32xf32>
    %40 = arith.select %37, %35, %39 : vector<1x32xi1>, vector<1x32xf32>
    %41 = vector.shape_cast %40 : vector<1x32xf32> to vector<1x1x32xf32>
    %c1_35 = arith.constant 1 : index
    %c2 = arith.constant 2 : index
    %c0_36 = arith.constant 0 : index
    %42 = vector.load %arg7[%c1_35, %c2, %c0_36] : memref<6x6x32xf32, #tpu.memory_space<vmem>>, vector<1x1x32xf32>
    tpu.vector_store %arg7[%c1_35, %c2, %c0_36], %41 {strides = array<i32>} : memref<6x6x32xf32, #tpu.memory_space<vmem>>, vector<1x1x32xf32>,
    %c2_37 = arith.constant 2 : index
    %c0_38 = arith.constant 0 : index
    %c0_39 = arith.constant 0 : index
    %43 = vector.load %arg2[%c2_37, %c0_38, %c0_39] : memref<16x32x32xbf16, #tpu.memory_space<vmem>>, vector<1x32x32xbf16>
    %44 = vector.shape_cast %43 : vector<1x32x32xbf16> to vector<32x32xbf16>
    %cst_40 = arith.constant dense<0.000000e+00> : vector<1x32xf32>
    %45 = tpu.matmul %18, %44, %cst_40 {dimension_numbers = #tpu.dot_dimension_numbers<[1], [0], [0], [1], [0, 0, 1, 1], [], []>} : vector<1x32xbf16>, vector<32x32xbf16>, vector<1x32xf32> -> vector<1x32xf32>
    %c0_41 = arith.constant 0 : index
    %c0_42 = arith.constant 0 : index
    %46 = vector.load %arg3[%c0_41, %c0_42] : memref<1x32xf32, #tpu.memory_space<vmem>>, vector<1x32xf32>
    %47 = arith.addf %45, %46 : vector<1x32xf32>
    %cst_43 = arith.constant 0.000000e+00 : f32
    %48 = vector.broadcast %cst_43 : f32 to vector<1x32xf32>
    %49 = arith.cmpf ogt, %47, %48 : vector<1x32xf32>
    %cst_44 = arith.constant 2.000000e-01 : f32
    %50 = vector.broadcast %cst_44 : f32 to vector<1x32xf32>
    %51 = arith.mulf %50, %47 : vector<1x32xf32>
    %52 = arith.select %49, %47, %51 : vector<1x32xi1>, vector<1x32xf32>
    %53 = vector.shape_cast %52 : vector<1x32xf32> to vector<1x1x32xf32>
    %c1_45 = arith.constant 1 : index
    %c3 = arith.constant 3 : index
    %c0_46 = arith.constant 0 : index
    %54 = vector.load %arg7[%c1_45, %c3, %c0_46] : memref<6x6x32xf32, #tpu.memory_space<vmem>>, vector<1x1x32xf32>
    tpu.vector_store %arg7[%c1_45, %c3, %c0_46], %53 {strides = array<i32>} : memref<6x6x32xf32, #tpu.memory_space<vmem>>, vector<1x1x32xf32>,
    %c3_47 = arith.constant 3 : index
    %c0_48 = arith.constant 0 : index
    %c0_49 = arith.constant 0 : index
    %55 = vector.load %arg2[%c3_47, %c0_48, %c0_49] : memref<16x32x32xbf16, #tpu.memory_space<vmem>>, vector<1x32x32xbf16>
    %56 = vector.shape_cast %55 : vector<1x32x32xbf16> to vector<32x32xbf16>
    %cst_50 = arith.constant dense<0.000000e+00> : vector<1x32xf32>
    %57 = tpu.matmul %18, %56, %cst_50 {dimension_numbers = #tpu.dot_dimension_numbers<[1], [0], [0], [1], [0, 0, 1, 1], [], []>} : vector<1x32xbf16>, vector<32x32xbf16>, vector<1x32xf32> -> vector<1x32xf32>
    %c0_51 = arith.constant 0 : index
    %c0_52 = arith.constant 0 : index
    %58 = vector.load %arg3[%c0_51, %c0_52] : memref<1x32xf32, #tpu.memory_space<vmem>>, vector<1x32xf32>
    %59 = arith.addf %57, %58 : vector<1x32xf32>
    %cst_53 = arith.constant 0.000000e+00 : f32
    %60 = vector.broadcast %cst_53 : f32 to vector<1x32xf32>
    %61 = arith.cmpf ogt, %59, %60 : vector<1x32xf32>
    %cst_54 = arith.constant 2.000000e-01 : f32
    %62 = vector.broadcast %cst_54 : f32 to vector<1x32xf32>
    %63 = arith.mulf %62, %59 : vector<1x32xf32>
    %64 = arith.select %61, %59, %63 : vector<1x32xi1>, vector<1x32xf32>
    %65 = vector.shape_cast %64 : vector<1x32xf32> to vector<1x1x32xf32>
    %c1_55 = arith.constant 1 : index
    %c4 = arith.constant 4 : index
    %c0_56 = arith.constant 0 : index
    %66 = vector.load %arg7[%c1_55, %c4, %c0_56] : memref<6x6x32xf32, #tpu.memory_space<vmem>>, vector<1x1x32xf32>
    tpu.vector_store %arg7[%c1_55, %c4, %c0_56], %65 {strides = array<i32>} : memref<6x6x32xf32, #tpu.memory_space<vmem>>, vector<1x1x32xf32>,
    %c4_57 = arith.constant 4 : index
    %c0_58 = arith.constant 0 : index
    %c0_59 = arith.constant 0 : index
    %67 = vector.load %arg2[%c4_57, %c0_58, %c0_59] : memref<16x32x32xbf16, #tpu.memory_space<vmem>>, vector<1x32x32xbf16>
    %68 = vector.shape_cast %67 : vector<1x32x32xbf16> to vector<32x32xbf16>
    %cst_60 = arith.constant dense<0.000000e+00> : vector<1x32xf32>
    %69 = tpu.matmul %18, %68, %cst_60 {dimension_numbers = #tpu.dot_dimension_numbers<[1], [0], [0], [1], [0, 0, 1, 1], [], []>} : vector<1x32xbf16>, vector<32x32xbf16>, vector<1x32xf32> -> vector<1x32xf32>
    %c0_61 = arith.constant 0 : index
    %c0_62 = arith.constant 0 : index
    %70 = vector.load %arg3[%c0_61, %c0_62] : memref<1x32xf32, #tpu.memory_space<vmem>>, vector<1x32xf32>
    %71 = arith.addf %69, %70 : vector<1x32xf32>
    %cst_63 = arith.constant 0.000000e+00 : f32
    %72 = vector.broadcast %cst_63 : f32 to vector<1x32xf32>
    %73 = arith.cmpf ogt, %71, %72 : vector<1x32xf32>
    %cst_64 = arith.constant 2.000000e-01 : f32
    %74 = vector.broadcast %cst_64 : f32 to vector<1x32xf32>
    %75 = arith.mulf %74, %71 : vector<1x32xf32>
    %76 = arith.select %73, %71, %75 : vector<1x32xi1>, vector<1x32xf32>
    %77 = vector.shape_cast %76 : vector<1x32xf32> to vector<1x1x32xf32>
    %c2_65 = arith.constant 2 : index
    %c1_66 = arith.constant 1 : index
    %c0_67 = arith.constant 0 : index
    %78 = vector.load %arg7[%c2_65, %c1_66, %c0_67] : memref<6x6x32xf32, #tpu.memory_space<vmem>>, vector<1x1x32xf32>
    tpu.vector_store %arg7[%c2_65, %c1_66, %c0_67], %77 {strides = array<i32>} : memref<6x6x32xf32, #tpu.memory_space<vmem>>, vector<1x1x32xf32>,
    %c5_68 = arith.constant 5 : index
    %c0_69 = arith.constant 0 : index
    %c0_70 = arith.constant 0 : index
    %79 = vector.load %arg2[%c5_68, %c0_69, %c0_70] : memref<16x32x32xbf16, #tpu.memory_space<vmem>>, vector<1x32x32xbf16>
    %80 = vector.shape_cast %79 : vector<1x32x32xbf16> to vector<32x32xbf16>
    %cst_71 = arith.constant dense<0.000000e+00> : vector<1x32xf32>
    %81 = tpu.matmul %18, %80, %cst_71 {dimension_numbers = #tpu.dot_dimension_numbers<[1], [0], [0], [1], [0, 0, 1, 1], [], []>} : vector<1x32xbf16>, vector<32x32xbf16>, vector<1x32xf32> -> vector<1x32xf32>
    %c0_72 = arith.constant 0 : index
    %c0_73 = arith.constant 0 : index
    %82 = vector.load %arg3[%c0_72, %c0_73] : memref<1x32xf32, #tpu.memory_space<vmem>>, vector<1x32xf32>
    %83 = arith.addf %81, %82 : vector<1x32xf32>
    %cst_74 = arith.constant 0.000000e+00 : f32
    %84 = vector.broadcast %cst_74 : f32 to vector<1x32xf32>
    %85 = arith.cmpf ogt, %83, %84 : vector<1x32xf32>
    %cst_75 = arith.constant 2.000000e-01 : f32
    %86 = vector.broadcast %cst_75 : f32 to vector<1x32xf32>
    %87 = arith.mulf %86, %83 : vector<1x32xf32>
    %88 = arith.select %85, %83, %87 : vector<1x32xi1>, vector<1x32xf32>
    %89 = vector.shape_cast %88 : vector<1x32xf32> to vector<1x1x32xf32>
    %c2_76 = arith.constant 2 : index
    %c2_77 = arith.constant 2 : index
    %c0_78 = arith.constant 0 : index
    %90 = vector.load %arg7[%c2_76, %c2_77, %c0_78] : memref<6x6x32xf32, #tpu.memory_space<vmem>>, vector<1x1x32xf32>
    tpu.vector_store %arg7[%c2_76, %c2_77, %c0_78], %89 {strides = array<i32>} : memref<6x6x32xf32, #tpu.memory_space<vmem>>, vector<1x1x32xf32>,
    %c6 = arith.constant 6 : index
    %c0_79 = arith.constant 0 : index
    %c0_80 = arith.constant 0 : index
    %91 = vector.load %arg2[%c6, %c0_79, %c0_80] : memref<16x32x32xbf16, #tpu.memory_space<vmem>>, vector<1x32x32xbf16>
    %92 = vector.shape_cast %91 : vector<1x32x32xbf16> to vector<32x32xbf16>
    %cst_81 = arith.constant dense<0.000000e+00> : vector<1x32xf32>
    %93 = tpu.matmul %18, %92, %cst_81 {dimension_numbers = #tpu.dot_dimension_numbers<[1], [0], [0], [1], [0, 0, 1, 1], [], []>} : vector<1x32xbf16>, vector<32x32xbf16>, vector<1x32xf32> -> vector<1x32xf32>
    %c0_82 = arith.constant 0 : index
    %c0_83 = arith.constant 0 : index
    %94 = vector.load %arg3[%c0_82, %c0_83] : memref<1x32xf32, #tpu.memory_space<vmem>>, vector<1x32xf32>
    %95 = arith.addf %93, %94 : vector<1x32xf32>
    %cst_84 = arith.constant 0.000000e+00 : f32
    %96 = vector.broadcast %cst_84 : f32 to vector<1x32xf32>
    %97 = arith.cmpf ogt, %95, %96 : vector<1x32xf32>
    %cst_85 = arith.constant 2.000000e-01 : f32
    %98 = vector.broadcast %cst_85 : f32 to vector<1x32xf32>
    %99 = arith.mulf %98, %95 : vector<1x32xf32>
    %100 = arith.select %97, %95, %99 : vector<1x32xi1>, vector<1x32xf32>
    %101 = vector.shape_cast %100 : vector<1x32xf32> to vector<1x1x32xf32>
    %c2_86 = arith.constant 2 : index
    %c3_87 = arith.constant 3 : index
    %c0_88 = arith.constant 0 : index
    %102 = vector.load %arg7[%c2_86, %c3_87, %c0_88] : memref<6x6x32xf32, #tpu.memory_space<vmem>>, vector<1x1x32xf32>
    tpu.vector_store %arg7[%c2_86, %c3_87, %c0_88], %101 {strides = array<i32>} : memref<6x6x32xf32, #tpu.memory_space<vmem>>, vector<1x1x32xf32>,
    %c7 = arith.constant 7 : index
    %c0_89 = arith.constant 0 : index
    %c0_90 = arith.constant 0 : index
    %103 = vector.load %arg2[%c7, %c0_89, %c0_90] : memref<16x32x32xbf16, #tpu.memory_space<vmem>>, vector<1x32x32xbf16>
    %104 = vector.shape_cast %103 : vector<1x32x32xbf16> to vector<32x32xbf16>
    %cst_91 = arith.constant dense<0.000000e+00> : vector<1x32xf32>
    %105 = tpu.matmul %18, %104, %cst_91 {dimension_numbers = #tpu.dot_dimension_numbers<[1], [0], [0], [1], [0, 0, 1, 1], [], []>} : vector<1x32xbf16>, vector<32x32xbf16>, vector<1x32xf32> -> vector<1x32xf32>
    %c0_92 = arith.constant 0 : index
    %c0_93 = arith.constant 0 : index
    %106 = vector.load %arg3[%c0_92, %c0_93] : memref<1x32xf32, #tpu.memory_space<vmem>>, vector<1x32xf32>
    %107 = arith.addf %105, %106 : vector<1x32xf32>
    %cst_94 = arith.constant 0.000000e+00 : f32
    %108 = vector.broadcast %cst_94 : f32 to vector<1x32xf32>
    %109 = arith.cmpf ogt, %107, %108 : vector<1x32xf32>
    %cst_95 = arith.constant 2.000000e-01 : f32
    %110 = vector.broadcast %cst_95 : f32 to vector<1x32xf32>
    %111 = arith.mulf %110, %107 : vector<1x32xf32>
    %112 = arith.select %109, %107, %111 : vector<1x32xi1>, vector<1x32xf32>
    %113 = vector.shape_cast %112 : vector<1x32xf32> to vector<1x1x32xf32>
    %c2_96 = arith.constant 2 : index
    %c4_97 = arith.constant 4 : index
    %c0_98 = arith.constant 0 : index
    %114 = vector.load %arg7[%c2_96, %c4_97, %c0_98] : memref<6x6x32xf32, #tpu.memory_space<vmem>>, vector<1x1x32xf32>
    tpu.vector_store %arg7[%c2_96, %c4_97, %c0_98], %113 {strides = array<i32>} : memref<6x6x32xf32, #tpu.memory_space<vmem>>, vector<1x1x32xf32>,
    %c8 = arith.constant 8 : index
    %c0_99 = arith.constant 0 : index
    %c0_100 = arith.constant 0 : index
    %115 = vector.load %arg2[%c8, %c0_99, %c0_100] : memref<16x32x32xbf16, #tpu.memory_space<vmem>>, vector<1x32x32xbf16>
    %116 = vector.shape_cast %115 : vector<1x32x32xbf16> to vector<32x32xbf16>
    %cst_101 = arith.constant dense<0.000000e+00> : vector<1x32xf32>
    %117 = tpu.matmul %18, %116, %cst_101 {dimension_numbers = #tpu.dot_dimension_numbers<[1], [0], [0], [1], [0, 0, 1, 1], [], []>} : vector<1x32xbf16>, vector<32x32xbf16>, vector<1x32xf32> -> vector<1x32xf32>
    %c0_102 = arith.constant 0 : index
    %c0_103 = arith.constant 0 : index
    %118 = vector.load %arg3[%c0_102, %c0_103] : memref<1x32xf32, #tpu.memory_space<vmem>>, vector<1x32xf32>
    %119 = arith.addf %117, %118 : vector<1x32xf32>
    %cst_104 = arith.constant 0.000000e+00 : f32
    %120 = vector.broadcast %cst_104 : f32 to vector<1x32xf32>
    %121 = arith.cmpf ogt, %119, %120 : vector<1x32xf32>
    %cst_105 = arith.constant 2.000000e-01 : f32
    %122 = vector.broadcast %cst_105 : f32 to vector<1x32xf32>
    %123 = arith.mulf %122, %119 : vector<1x32xf32>
    %124 = arith.select %121, %119, %123 : vector<1x32xi1>, vector<1x32xf32>
    %125 = vector.shape_cast %124 : vector<1x32xf32> to vector<1x1x32xf32>
    %c3_106 = arith.constant 3 : index
    %c1_107 = arith.constant 1 : index
    %c0_108 = arith.constant 0 : index
    %126 = vector.load %arg7[%c3_106, %c1_107, %c0_108] : memref<6x6x32xf32, #tpu.memory_space<vmem>>, vector<1x1x32xf32>
    tpu.vector_store %arg7[%c3_106, %c1_107, %c0_108], %125 {strides = array<i32>} : memref<6x6x32xf32, #tpu.memory_space<vmem>>, vector<1x1x32xf32>,
    %c9 = arith.constant 9 : index
    %c0_109 = arith.constant 0 : index
    %c0_110 = arith.constant 0 : index
    %127 = vector.load %arg2[%c9, %c0_109, %c0_110] : memref<16x32x32xbf16, #tpu.memory_space<vmem>>, vector<1x32x32xbf16>
    %128 = vector.shape_cast %127 : vector<1x32x32xbf16> to vector<32x32xbf16>
    %cst_111 = arith.constant dense<0.000000e+00> : vector<1x32xf32>
    %129 = tpu.matmul %18, %128, %cst_111 {dimension_numbers = #tpu.dot_dimension_numbers<[1], [0], [0], [1], [0, 0, 1, 1], [], []>} : vector<1x32xbf16>, vector<32x32xbf16>, vector<1x32xf32> -> vector<1x32xf32>
    %c0_112 = arith.constant 0 : index
    %c0_113 = arith.constant 0 : index
    %130 = vector.load %arg3[%c0_112, %c0_113] : memref<1x32xf32, #tpu.memory_space<vmem>>, vector<1x32xf32>
    %131 = arith.addf %129, %130 : vector<1x32xf32>
    %cst_114 = arith.constant 0.000000e+00 : f32
    %132 = vector.broadcast %cst_114 : f32 to vector<1x32xf32>
    %133 = arith.cmpf ogt, %131, %132 : vector<1x32xf32>
    %cst_115 = arith.constant 2.000000e-01 : f32
    %134 = vector.broadcast %cst_115 : f32 to vector<1x32xf32>
    %135 = arith.mulf %134, %131 : vector<1x32xf32>
    %136 = arith.select %133, %131, %135 : vector<1x32xi1>, vector<1x32xf32>
    %137 = vector.shape_cast %136 : vector<1x32xf32> to vector<1x1x32xf32>
    %c3_116 = arith.constant 3 : index
    %c2_117 = arith.constant 2 : index
    %c0_118 = arith.constant 0 : index
    %138 = vector.load %arg7[%c3_116, %c2_117, %c0_118] : memref<6x6x32xf32, #tpu.memory_space<vmem>>, vector<1x1x32xf32>
    tpu.vector_store %arg7[%c3_116, %c2_117, %c0_118], %137 {strides = array<i32>} : memref<6x6x32xf32, #tpu.memory_space<vmem>>, vector<1x1x32xf32>,
    %c10 = arith.constant 10 : index
    %c0_119 = arith.constant 0 : index
    %c0_120 = arith.constant 0 : index
    %139 = vector.load %arg2[%c10, %c0_119, %c0_120] : memref<16x32x32xbf16, #tpu.memory_space<vmem>>, vector<1x32x32xbf16>
    %140 = vector.shape_cast %139 : vector<1x32x32xbf16> to vector<32x32xbf16>
    %cst_121 = arith.constant dense<0.000000e+00> : vector<1x32xf32>
    %141 = tpu.matmul %18, %140, %cst_121 {dimension_numbers = #tpu.dot_dimension_numbers<[1], [0], [0], [1], [0, 0, 1, 1], [], []>} : vector<1x32xbf16>, vector<32x32xbf16>, vector<1x32xf32> -> vector<1x32xf32>
    %c0_122 = arith.constant 0 : index
    %c0_123 = arith.constant 0 : index
    %142 = vector.load %arg3[%c0_122, %c0_123] : memref<1x32xf32, #tpu.memory_space<vmem>>, vector<1x32xf32>
    %143 = arith.addf %141, %142 : vector<1x32xf32>
    %cst_124 = arith.constant 0.000000e+00 : f32
    %144 = vector.broadcast %cst_124 : f32 to vector<1x32xf32>
    %145 = arith.cmpf ogt, %143, %144 : vector<1x32xf32>
    %cst_125 = arith.constant 2.000000e-01 : f32
    %146 = vector.broadcast %cst_125 : f32 to vector<1x32xf32>
    %147 = arith.mulf %146, %143 : vector<1x32xf32>
    %148 = arith.select %145, %143, %147 : vector<1x32xi1>, vector<1x32xf32>
    %149 = vector.shape_cast %148 : vector<1x32xf32> to vector<1x1x32xf32>
    %c3_126 = arith.constant 3 : index
    %c3_127 = arith.constant 3 : index
    %c0_128 = arith.constant 0 : index
    %150 = vector.load %arg7[%c3_126, %c3_127, %c0_128] : memref<6x6x32xf32, #tpu.memory_space<vmem>>, vector<1x1x32xf32>
    tpu.vector_store %arg7[%c3_126, %c3_127, %c0_128], %149 {strides = array<i32>} : memref<6x6x32xf32, #tpu.memory_space<vmem>>, vector<1x1x32xf32>,
    %c11 = arith.constant 11 : index
    %c0_129 = arith.constant 0 : index
    %c0_130 = arith.constant 0 : index
    %151 = vector.load %arg2[%c11, %c0_129, %c0_130] : memref<16x32x32xbf16, #tpu.memory_space<vmem>>, vector<1x32x32xbf16>
    %152 = vector.shape_cast %151 : vector<1x32x32xbf16> to vector<32x32xbf16>
    %cst_131 = arith.constant dense<0.000000e+00> : vector<1x32xf32>
    %153 = tpu.matmul %18, %152, %cst_131 {dimension_numbers = #tpu.dot_dimension_numbers<[1], [0], [0], [1], [0, 0, 1, 1], [], []>} : vector<1x32xbf16>, vector<32x32xbf16>, vector<1x32xf32> -> vector<1x32xf32>
    %c0_132 = arith.constant 0 : index
    %c0_133 = arith.constant 0 : index
    %154 = vector.load %arg3[%c0_132, %c0_133] : memref<1x32xf32, #tpu.memory_space<vmem>>, vector<1x32xf32>
    %155 = arith.addf %153, %154 : vector<1x32xf32>
    %cst_134 = arith.constant 0.000000e+00 : f32
    %156 = vector.broadcast %cst_134 : f32 to vector<1x32xf32>
    %157 = arith.cmpf ogt, %155, %156 : vector<1x32xf32>
    %cst_135 = arith.constant 2.000000e-01 : f32
    %158 = vector.broadcast %cst_135 : f32 to vector<1x32xf32>
    %159 = arith.mulf %158, %155 : vector<1x32xf32>
    %160 = arith.select %157, %155, %159 : vector<1x32xi1>, vector<1x32xf32>
    %161 = vector.shape_cast %160 : vector<1x32xf32> to vector<1x1x32xf32>
    %c3_136 = arith.constant 3 : index
    %c4_137 = arith.constant 4 : index
    %c0_138 = arith.constant 0 : index
    %162 = vector.load %arg7[%c3_136, %c4_137, %c0_138] : memref<6x6x32xf32, #tpu.memory_space<vmem>>, vector<1x1x32xf32>
    tpu.vector_store %arg7[%c3_136, %c4_137, %c0_138], %161 {strides = array<i32>} : memref<6x6x32xf32, #tpu.memory_space<vmem>>, vector<1x1x32xf32>,
    %c12 = arith.constant 12 : index
    %c0_139 = arith.constant 0 : index
    %c0_140 = arith.constant 0 : index
    %163 = vector.load %arg2[%c12, %c0_139, %c0_140] : memref<16x32x32xbf16, #tpu.memory_space<vmem>>, vector<1x32x32xbf16>
    %164 = vector.shape_cast %163 : vector<1x32x32xbf16> to vector<32x32xbf16>
    %cst_141 = arith.constant dense<0.000000e+00> : vector<1x32xf32>
    %165 = tpu.matmul %18, %164, %cst_141 {dimension_numbers = #tpu.dot_dimension_numbers<[1], [0], [0], [1], [0, 0, 1, 1], [], []>} : vector<1x32xbf16>, vector<32x32xbf16>, vector<1x32xf32> -> vector<1x32xf32>
    %c0_142 = arith.constant 0 : index
    %c0_143 = arith.constant 0 : index
    %166 = vector.load %arg3[%c0_142, %c0_143] : memref<1x32xf32, #tpu.memory_space<vmem>>, vector<1x32xf32>
    %167 = arith.addf %165, %166 : vector<1x32xf32>
    %cst_144 = arith.constant 0.000000e+00 : f32
    %168 = vector.broadcast %cst_144 : f32 to vector<1x32xf32>
    %169 = arith.cmpf ogt, %167, %168 : vector<1x32xf32>
    %cst_145 = arith.constant 2.000000e-01 : f32
    %170 = vector.broadcast %cst_145 : f32 to vector<1x32xf32>
    %171 = arith.mulf %170, %167 : vector<1x32xf32>
    %172 = arith.select %169, %167, %171 : vector<1x32xi1>, vector<1x32xf32>
    %173 = vector.shape_cast %172 : vector<1x32xf32> to vector<1x1x32xf32>
    %c4_146 = arith.constant 4 : index
    %c1_147 = arith.constant 1 : index
    %c0_148 = arith.constant 0 : index
    %174 = vector.load %arg7[%c4_146, %c1_147, %c0_148] : memref<6x6x32xf32, #tpu.memory_space<vmem>>, vector<1x1x32xf32>
    tpu.vector_store %arg7[%c4_146, %c1_147, %c0_148], %173 {strides = array<i32>} : memref<6x6x32xf32, #tpu.memory_space<vmem>>, vector<1x1x32xf32>,
    %c13 = arith.constant 13 : index
    %c0_149 = arith.constant 0 : index
    %c0_150 = arith.constant 0 : index
    %175 = vector.load %arg2[%c13, %c0_149, %c0_150] : memref<16x32x32xbf16, #tpu.memory_space<vmem>>, vector<1x32x32xbf16>
    %176 = vector.shape_cast %175 : vector<1x32x32xbf16> to vector<32x32xbf16>
    %cst_151 = arith.constant dense<0.000000e+00> : vector<1x32xf32>
    %177 = tpu.matmul %18, %176, %cst_151 {dimension_numbers = #tpu.dot_dimension_numbers<[1], [0], [0], [1], [0, 0, 1, 1], [], []>} : vector<1x32xbf16>, vector<32x32xbf16>, vector<1x32xf32> -> vector<1x32xf32>
    %c0_152 = arith.constant 0 : index
    %c0_153 = arith.constant 0 : index
    %178 = vector.load %arg3[%c0_152, %c0_153] : memref<1x32xf32, #tpu.memory_space<vmem>>, vector<1x32xf32>
    %179 = arith.addf %177, %178 : vector<1x32xf32>
    %cst_154 = arith.constant 0.000000e+00 : f32
    %180 = vector.broadcast %cst_154 : f32 to vector<1x32xf32>
    %181 = arith.cmpf ogt, %179, %180 : vector<1x32xf32>
    %cst_155 = arith.constant 2.000000e-01 : f32
    %182 = vector.broadcast %cst_155 : f32 to vector<1x32xf32>
    %183 = arith.mulf %182, %179 : vector<1x32xf32>
    %184 = arith.select %181, %179, %183 : vector<1x32xi1>, vector<1x32xf32>
    %185 = vector.shape_cast %184 : vector<1x32xf32> to vector<1x1x32xf32>
    %c4_156 = arith.constant 4 : index
    %c2_157 = arith.constant 2 : index
    %c0_158 = arith.constant 0 : index
    %186 = vector.load %arg7[%c4_156, %c2_157, %c0_158] : memref<6x6x32xf32, #tpu.memory_space<vmem>>, vector<1x1x32xf32>
    tpu.vector_store %arg7[%c4_156, %c2_157, %c0_158], %185 {strides = array<i32>} : memref<6x6x32xf32, #tpu.memory_space<vmem>>, vector<1x1x32xf32>,
    %c14 = arith.constant 14 : index
    %c0_159 = arith.constant 0 : index
    %c0_160 = arith.constant 0 : index
    %187 = vector.load %arg2[%c14, %c0_159, %c0_160] : memref<16x32x32xbf16, #tpu.memory_space<vmem>>, vector<1x32x32xbf16>
    %188 = vector.shape_cast %187 : vector<1x32x32xbf16> to vector<32x32xbf16>
    %cst_161 = arith.constant dense<0.000000e+00> : vector<1x32xf32>
    %189 = tpu.matmul %18, %188, %cst_161 {dimension_numbers = #tpu.dot_dimension_numbers<[1], [0], [0], [1], [0, 0, 1, 1], [], []>} : vector<1x32xbf16>, vector<32x32xbf16>, vector<1x32xf32> -> vector<1x32xf32>
    %c0_162 = arith.constant 0 : index
    %c0_163 = arith.constant 0 : index
    %190 = vector.load %arg3[%c0_162, %c0_163] : memref<1x32xf32, #tpu.memory_space<vmem>>, vector<1x32xf32>
    %191 = arith.addf %189, %190 : vector<1x32xf32>
    %cst_164 = arith.constant 0.000000e+00 : f32
    %192 = vector.broadcast %cst_164 : f32 to vector<1x32xf32>
    %193 = arith.cmpf ogt, %191, %192 : vector<1x32xf32>
    %cst_165 = arith.constant 2.000000e-01 : f32
    %194 = vector.broadcast %cst_165 : f32 to vector<1x32xf32>
    %195 = arith.mulf %194, %191 : vector<1x32xf32>
    %196 = arith.select %193, %191, %195 : vector<1x32xi1>, vector<1x32xf32>
    %197 = vector.shape_cast %196 : vector<1x32xf32> to vector<1x1x32xf32>
    %c4_166 = arith.constant 4 : index
    %c3_167 = arith.constant 3 : index
    %c0_168 = arith.constant 0 : index
    %198 = vector.load %arg7[%c4_166, %c3_167, %c0_168] : memref<6x6x32xf32, #tpu.memory_space<vmem>>, vector<1x1x32xf32>
    tpu.vector_store %arg7[%c4_166, %c3_167, %c0_168], %197 {strides = array<i32>} : memref<6x6x32xf32, #tpu.memory_space<vmem>>, vector<1x1x32xf32>,
    %c15 = arith.constant 15 : index
    %c0_169 = arith.constant 0 : index
    %c0_170 = arith.constant 0 : index
    %199 = vector.load %arg2[%c15, %c0_169, %c0_170] : memref<16x32x32xbf16, #tpu.memory_space<vmem>>, vector<1x32x32xbf16>
    %200 = vector.shape_cast %199 : vector<1x32x32xbf16> to vector<32x32xbf16>
    %cst_171 = arith.constant dense<0.000000e+00> : vector<1x32xf32>
    %201 = tpu.matmul %18, %200, %cst_171 {dimension_numbers = #tpu.dot_dimension_numbers<[1], [0], [0], [1], [0, 0, 1, 1], [], []>} : vector<1x32xbf16>, vector<32x32xbf16>, vector<1x32xf32> -> vector<1x32xf32>
    %c0_172 = arith.constant 0 : index
    %c0_173 = arith.constant 0 : index
    %202 = vector.load %arg3[%c0_172, %c0_173] : memref<1x32xf32, #tpu.memory_space<vmem>>, vector<1x32xf32>
    %203 = arith.addf %201, %202 : vector<1x32xf32>
    %cst_174 = arith.constant 0.000000e+00 : f32
    %204 = vector.broadcast %cst_174 : f32 to vector<1x32xf32>
    %205 = arith.cmpf ogt, %203, %204 : vector<1x32xf32>
    %cst_175 = arith.constant 2.000000e-01 : f32
    %206 = vector.broadcast %cst_175 : f32 to vector<1x32xf32>
    %207 = arith.mulf %206, %203 : vector<1x32xf32>
    %208 = arith.select %205, %203, %207 : vector<1x32xi1>, vector<1x32xf32>
    %209 = vector.shape_cast %208 : vector<1x32xf32> to vector<1x1x32xf32>
    %c4_176 = arith.constant 4 : index
    %c4_177 = arith.constant 4 : index
    %c0_178 = arith.constant 0 : index
    %210 = vector.load %arg7[%c4_176, %c4_177, %c0_178] : memref<6x6x32xf32, #tpu.memory_space<vmem>>, vector<1x1x32xf32>
    tpu.vector_store %arg7[%c4_176, %c4_177, %c0_178], %209 {strides = array<i32>} : memref<6x6x32xf32, #tpu.memory_space<vmem>>, vector<1x1x32xf32>,
    %cst_179 = arith.constant 0.000000e+00 : f32
    %211 = vector.broadcast %cst_179 : f32 to vector<16x32xf32>
    %c0_180 = arith.constant 0 : index
    %c0_181 = arith.constant 0 : index
    %c0_182 = arith.constant 0 : index
    %212 = vector.load %arg7[%c0_180, %c0_181, %c0_182] : memref<6x6x32xf32, #tpu.memory_space<vmem>>, vector<4x4x32xf32>
    %213 = vector.shape_cast %212 : vector<4x4x32xf32> to vector<16x32xf32>
    %214 = arith.truncf %213 : vector<16x32xf32> to vector<16x32xbf16>
    %c0_183 = arith.constant 0 : index
    %c0_184 = arith.constant 0 : index
    %c0_185 = arith.constant 0 : index
    %215 = vector.load %arg4[%c0_183, %c0_184, %c0_185] : memref<9x32x32xbf16, #tpu.memory_space<vmem>>, vector<1x32x32xbf16>
    %216 = vector.shape_cast %215 : vector<1x32x32xbf16> to vector<32x32xbf16>
    %cst_186 = arith.constant dense<0.000000e+00> : vector<16x32xf32>
    %217 = tpu.matmul %214, %216, %cst_186 {dimension_numbers = #tpu.dot_dimension_numbers<[1], [0], [0], [1], [0, 0, 1, 1], [], []>} : vector<16x32xbf16>, vector<32x32xbf16>, vector<16x32xf32> -> vector<16x32xf32>
    %218 = arith.addf %211, %217 : vector<16x32xf32>
    %c0_187 = arith.constant 0 : index
    %c1_188 = arith.constant 1 : index
    %c0_189 = arith.constant 0 : index
    %219 = vector.load %arg7[%c0_187, %c1_188, %c0_189] : memref<6x6x32xf32, #tpu.memory_space<vmem>>, vector<4x4x32xf32>
    %220 = vector.shape_cast %219 : vector<4x4x32xf32> to vector<16x32xf32>
    %221 = arith.truncf %220 : vector<16x32xf32> to vector<16x32xbf16>
    %c1_190 = arith.constant 1 : index
    %c0_191 = arith.constant 0 : index
    %c0_192 = arith.constant 0 : index
    %222 = vector.load %arg4[%c1_190, %c0_191, %c0_192] : memref<9x32x32xbf16, #tpu.memory_space<vmem>>, vector<1x32x32xbf16>
    %223 = vector.shape_cast %222 : vector<1x32x32xbf16> to vector<32x32xbf16>
    %cst_193 = arith.constant dense<0.000000e+00> : vector<16x32xf32>
    %224 = tpu.matmul %221, %223, %cst_193 {dimension_numbers = #tpu.dot_dimension_numbers<[1], [0], [0], [1], [0, 0, 1, 1], [], []>} : vector<16x32xbf16>, vector<32x32xbf16>, vector<16x32xf32> -> vector<16x32xf32>
    %225 = arith.addf %218, %224 : vector<16x32xf32>
    %c0_194 = arith.constant 0 : index
    %c2_195 = arith.constant 2 : index
    %c0_196 = arith.constant 0 : index
    %226 = vector.load %arg7[%c0_194, %c2_195, %c0_196] : memref<6x6x32xf32, #tpu.memory_space<vmem>>, vector<4x4x32xf32>
    %227 = vector.shape_cast %226 : vector<4x4x32xf32> to vector<16x32xf32>
    %228 = arith.truncf %227 : vector<16x32xf32> to vector<16x32xbf16>
    %c2_197 = arith.constant 2 : index
    %c0_198 = arith.constant 0 : index
    %c0_199 = arith.constant 0 : index
    %229 = vector.load %arg4[%c2_197, %c0_198, %c0_199] : memref<9x32x32xbf16, #tpu.memory_space<vmem>>, vector<1x32x32xbf16>
    %230 = vector.shape_cast %229 : vector<1x32x32xbf16> to vector<32x32xbf16>
    %cst_200 = arith.constant dense<0.000000e+00> : vector<16x32xf32>
    %231 = tpu.matmul %228, %230, %cst_200 {dimension_numbers = #tpu.dot_dimension_numbers<[1], [0], [0], [1], [0, 0, 1, 1], [], []>} : vector<16x32xbf16>, vector<32x32xbf16>, vector<16x32xf32> -> vector<16x32xf32>
    %232 = arith.addf %225, %231 : vector<16x32xf32>
    %c1_201 = arith.constant 1 : index
    %c0_202 = arith.constant 0 : index
    %c0_203 = arith.constant 0 : index
    %233 = vector.load %arg7[%c1_201, %c0_202, %c0_203] : memref<6x6x32xf32, #tpu.memory_space<vmem>>, vector<4x4x32xf32>
    %234 = vector.shape_cast %233 : vector<4x4x32xf32> to vector<16x32xf32>
    %235 = arith.truncf %234 : vector<16x32xf32> to vector<16x32xbf16>
    %c3_204 = arith.constant 3 : index
    %c0_205 = arith.constant 0 : index
    %c0_206 = arith.constant 0 : index
    %236 = vector.load %arg4[%c3_204, %c0_205, %c0_206] : memref<9x32x32xbf16, #tpu.memory_space<vmem>>, vector<1x32x32xbf16>
    %237 = vector.shape_cast %236 : vector<1x32x32xbf16> to vector<32x32xbf16>
    %cst_207 = arith.constant dense<0.000000e+00> : vector<16x32xf32>
    %238 = tpu.matmul %235, %237, %cst_207 {dimension_numbers = #tpu.dot_dimension_numbers<[1], [0], [0], [1], [0, 0, 1, 1], [], []>} : vector<16x32xbf16>, vector<32x32xbf16>, vector<16x32xf32> -> vector<16x32xf32>
    %239 = arith.addf %232, %238 : vector<16x32xf32>
    %c1_208 = arith.constant 1 : index
    %c1_209 = arith.constant 1 : index
    %c0_210 = arith.constant 0 : index
    %240 = vector.load %arg7[%c1_208, %c1_209, %c0_210] : memref<6x6x32xf32, #tpu.memory_space<vmem>>, vector<4x4x32xf32>
    %241 = vector.shape_cast %240 : vector<4x4x32xf32> to vector<16x32xf32>
    %242 = arith.truncf %241 : vector<16x32xf32> to vector<16x32xbf16>
    %c4_211 = arith.constant 4 : index
    %c0_212 = arith.constant 0 : index
    %c0_213 = arith.constant 0 : index
    %243 = vector.load %arg4[%c4_211, %c0_212, %c0_213] : memref<9x32x32xbf16, #tpu.memory_space<vmem>>, vector<1x32x32xbf16>
    %244 = vector.shape_cast %243 : vector<1x32x32xbf16> to vector<32x32xbf16>
    %cst_214 = arith.constant dense<0.000000e+00> : vector<16x32xf32>
    %245 = tpu.matmul %242, %244, %cst_214 {dimension_numbers = #tpu.dot_dimension_numbers<[1], [0], [0], [1], [0, 0, 1, 1], [], []>} : vector<16x32xbf16>, vector<32x32xbf16>, vector<16x32xf32> -> vector<16x32xf32>
    %246 = arith.addf %239, %245 : vector<16x32xf32>
    %c1_215 = arith.constant 1 : index
    %c2_216 = arith.constant 2 : index
    %c0_217 = arith.constant 0 : index
    %247 = vector.load %arg7[%c1_215, %c2_216, %c0_217] : memref<6x6x32xf32, #tpu.memory_space<vmem>>, vector<4x4x32xf32>
    %248 = vector.shape_cast %247 : vector<4x4x32xf32> to vector<16x32xf32>
    %249 = arith.truncf %248 : vector<16x32xf32> to vector<16x32xbf16>
    %c5_218 = arith.constant 5 : index
    %c0_219 = arith.constant 0 : index
    %c0_220 = arith.constant 0 : index
    %250 = vector.load %arg4[%c5_218, %c0_219, %c0_220] : memref<9x32x32xbf16, #tpu.memory_space<vmem>>, vector<1x32x32xbf16>
    %251 = vector.shape_cast %250 : vector<1x32x32xbf16> to vector<32x32xbf16>
    %cst_221 = arith.constant dense<0.000000e+00> : vector<16x32xf32>
    %252 = tpu.matmul %249, %251, %cst_221 {dimension_numbers = #tpu.dot_dimension_numbers<[1], [0], [0], [1], [0, 0, 1, 1], [], []>} : vector<16x32xbf16>, vector<32x32xbf16>, vector<16x32xf32> -> vector<16x32xf32>
    %253 = arith.addf %246, %252 : vector<16x32xf32>
    %c2_222 = arith.constant 2 : index
    %c0_223 = arith.constant 0 : index
    %c0_224 = arith.constant 0 : index
    %254 = vector.load %arg7[%c2_222, %c0_223, %c0_224] : memref<6x6x32xf32, #tpu.memory_space<vmem>>, vector<4x4x32xf32>
    %255 = vector.shape_cast %254 : vector<4x4x32xf32> to vector<16x32xf32>
    %256 = arith.truncf %255 : vector<16x32xf32> to vector<16x32xbf16>
    %c6_225 = arith.constant 6 : index
    %c0_226 = arith.constant 0 : index
    %c0_227 = arith.constant 0 : index
    %257 = vector.load %arg4[%c6_225, %c0_226, %c0_227] : memref<9x32x32xbf16, #tpu.memory_space<vmem>>, vector<1x32x32xbf16>
    %258 = vector.shape_cast %257 : vector<1x32x32xbf16> to vector<32x32xbf16>
    %cst_228 = arith.constant dense<0.000000e+00> : vector<16x32xf32>
    %259 = tpu.matmul %256, %258, %cst_228 {dimension_numbers = #tpu.dot_dimension_numbers<[1], [0], [0], [1], [0, 0, 1, 1], [], []>} : vector<16x32xbf16>, vector<32x32xbf16>, vector<16x32xf32> -> vector<16x32xf32>
    %260 = arith.addf %253, %259 : vector<16x32xf32>
    %c2_229 = arith.constant 2 : index
    %c1_230 = arith.constant 1 : index
    %c0_231 = arith.constant 0 : index
    %261 = vector.load %arg7[%c2_229, %c1_230, %c0_231] : memref<6x6x32xf32, #tpu.memory_space<vmem>>, vector<4x4x32xf32>
    %262 = vector.shape_cast %261 : vector<4x4x32xf32> to vector<16x32xf32>
    %263 = arith.truncf %262 : vector<16x32xf32> to vector<16x32xbf16>
    %c7_232 = arith.constant 7 : index
    %c0_233 = arith.constant 0 : index
    %c0_234 = arith.constant 0 : index
    %264 = vector.load %arg4[%c7_232, %c0_233, %c0_234] : memref<9x32x32xbf16, #tpu.memory_space<vmem>>, vector<1x32x32xbf16>
    %265 = vector.shape_cast %264 : vector<1x32x32xbf16> to vector<32x32xbf16>
    %cst_235 = arith.constant dense<0.000000e+00> : vector<16x32xf32>
    %266 = tpu.matmul %263, %265, %cst_235 {dimension_numbers = #tpu.dot_dimension_numbers<[1], [0], [0], [1], [0, 0, 1, 1], [], []>} : vector<16x32xbf16>, vector<32x32xbf16>, vector<16x32xf32> -> vector<16x32xf32>
    %267 = arith.addf %260, %266 : vector<16x32xf32>
    %c2_236 = arith.constant 2 : index
    %c2_237 = arith.constant 2 : index
    %c0_238 = arith.constant 0 : index
    %268 = vector.load %arg7[%c2_236, %c2_237, %c0_238] : memref<6x6x32xf32, #tpu.memory_space<vmem>>, vector<4x4x32xf32>
    %269 = vector.shape_cast %268 : vector<4x4x32xf32> to vector<16x32xf32>
    %270 = arith.truncf %269 : vector<16x32xf32> to vector<16x32xbf16>
    %c8_239 = arith.constant 8 : index
    %c0_240 = arith.constant 0 : index
    %c0_241 = arith.constant 0 : index
    %271 = vector.load %arg4[%c8_239, %c0_240, %c0_241] : memref<9x32x32xbf16, #tpu.memory_space<vmem>>, vector<1x32x32xbf16>
    %272 = vector.shape_cast %271 : vector<1x32x32xbf16> to vector<32x32xbf16>
    %cst_242 = arith.constant dense<0.000000e+00> : vector<16x32xf32>
    %273 = tpu.matmul %270, %272, %cst_242 {dimension_numbers = #tpu.dot_dimension_numbers<[1], [0], [0], [1], [0, 0, 1, 1], [], []>} : vector<16x32xbf16>, vector<32x32xbf16>, vector<16x32xf32> -> vector<16x32xf32>
    %274 = arith.addf %267, %273 : vector<16x32xf32>
    %c0_243 = arith.constant 0 : index
    %c0_244 = arith.constant 0 : index
    %275 = vector.load %arg5[%c0_243, %c0_244] : memref<1x32xf32, #tpu.memory_space<vmem>>, vector<1x32xf32>
    %276 = vector.broadcast %275 : vector<1x32xf32> to vector<16x32xf32>
    %277 = arith.addf %274, %276 : vector<16x32xf32>
    %cst_245 = arith.constant 0.000000e+00 : f32
    %278 = vector.broadcast %cst_245 : f32 to vector<16x32xf32>
    %279 = arith.cmpf ogt, %277, %278 : vector<16x32xf32>
    %cst_246 = arith.constant 2.000000e-01 : f32
    %280 = vector.broadcast %cst_246 : f32 to vector<16x32xf32>
    %281 = arith.mulf %280, %277 : vector<16x32xf32>
    %282 = arith.select %279, %277, %281 : vector<16x32xi1>, vector<16x32xf32>
    %283 = arith.mulf %282, %282 : vector<16x32xf32>
    %cst_247 = arith.constant dense<0.000000e+00> : vector<16xf32>
    %284 = vector.multi_reduction <add>, %283, %cst_247 [1] : vector<16x32xf32> to vector<16xf32>
    %285 = vector.shape_cast %284 : vector<16xf32> to vector<16x1xf32>
    %cst_248 = arith.constant 3.200000e+01 : f32
    %286 = vector.broadcast %cst_248 : f32 to vector<16x1xf32>
    %287 = arith.divf %285, %286 : vector<16x1xf32>
    %cst_249 = arith.constant 9.99999993E-9 : f32
    %288 = vector.broadcast %cst_249 : f32 to vector<16x1xf32>
    %289 = arith.addf %287, %288 : vector<16x1xf32>
    %290 = math.rsqrt %289 : vector<16x1xf32>
    %291 = vector.broadcast %290 : vector<16x1xf32> to vector<16x32xf32>
    %292 = arith.mulf %282, %291 : vector<16x32xf32>
    %293 = tpu.transpose %292, [1, 0] : vector<16x32xf32> -> vector<32x16xf32>
    %294 = vector.shape_cast %293 : vector<32x16xf32> to vector<1x32x16xf32>
    %c0_250 = arith.constant 0 : index
    %c0_251 = arith.constant 0 : index
    %c0_252 = arith.constant 0 : index
    %295 = vector.load %arg6[%c0_250, %c0_251, %c0_252] : memref<1x32x16xf32, #tpu.memory_space<vmem>>, vector<1x32x16xf32>
    tpu.vector_store %arg6[%c0_250, %c0_251, %c0_252], %294 {strides = array<i32>} : memref<1x32x16xf32, #tpu.memory_space<vmem>>, vector<1x32x16xf32>,
    return
  }
  func.func @transform_0(%arg0: i32) -> (i32, i32, i32) {
    %c0_i32 = arith.constant 0 : i32
    %c0_i32_0 = arith.constant 0 : i32
    %c0_i32_1 = arith.constant 0 : i32
    return %arg0, %c0_i32, %c0_i32_0 : i32, i32, i32
  }
  func.func @transform_1(%arg0: i32) -> (i32, i32, i32) {
    %c0_i32 = arith.constant 0 : i32
    %c0_i32_0 = arith.constant 0 : i32
    %c0_i32_1 = arith.constant 0 : i32
    %c0_i32_2 = arith.constant 0 : i32
    return %c0_i32, %c0_i32_0, %c0_i32_1 : i32, i32, i32
  }
  func.func @transform_2(%arg0: i32) -> (i32, i32) {
    %c0_i32 = arith.constant 0 : i32
    %c0_i32_0 = arith.constant 0 : i32
    %c0_i32_1 = arith.constant 0 : i32
    return %c0_i32, %c0_i32_0 : i32, i32
  }
  func.func @transform_3(%arg0: i32) -> (i32, i32, i32) {
    %c0_i32 = arith.constant 0 : i32
    %c0_i32_0 = arith.constant 0 : i32
    %c0_i32_1 = arith.constant 0 : i32
    %c0_i32_2 = arith.constant 0 : i32
    return %c0_i32, %c0_i32_0, %c0_i32_1 : i32, i32, i32
  }
  func.func @transform_4(%arg0: i32) -> (i32, i32) {
    %c0_i32 = arith.constant 0 : i32
    %c0_i32_0 = arith.constant 0 : i32
    %c0_i32_1 = arith.constant 0 : i32
    return %c0_i32, %c0_i32_0 : i32, i32
  }
  func.func @transform_5(%arg0: i32) -> (i32, i32, i32) {
    %c0_i32 = arith.constant 0 : i32
    %c0_i32_0 = arith.constant 0 : i32
    %c0_i32_1 = arith.constant 0 : i32
    return %arg0, %c0_i32, %c0_i32_0 : i32, i32, i32
  }
}

</mosaic_0001>

<llo_original>
// kernel: tpu_custom_call.1
$region0: #{tpu_custom_call.1}
  #allocation0 [shape = 'u32[]', space=smem, size = 0x4, offset = 0x4, fixed_abs, tag = 'smem constant byte address 0x4 - core index']
  #allocation1 [shape = 'u32[144,128]{1,0:T(1,128)}', space=vmem, size = 0x12000, scoped, tag = 'internal scratch']
  #allocation2 [shape = 'f32[6,6,32]{2,1,0:T(8,128)}', space=vmem, size = 0x6000, scoped, tag = 'scratch operand']
  %s0 = inlined_call_operand.hbm [shape: f32[2,1,32], index: 0, kind: input, shape index: {}]
  %s1 = inlined_call_operand.hbm [shape: bf16[16,32,32], index: 1, kind: input, shape index: {}]
  %s2 = inlined_call_operand.hbm [shape: f32[1,32], index: 2, kind: input, shape index: {}]
  %s3 = inlined_call_operand.hbm [shape: bf16[9,32,32], index: 3, kind: input, shape index: {}]
  %s4 = inlined_call_operand.hbm [shape: f32[1,32], index: 4, kind: input, shape index: {}]
  %s5 = inlined_call_operand.hbm [shape: f32[2,32,16], index: 5, kind: output, shape index: {}]
  %s6 = sld [smem:[#allocation0]]
  $region73: #{tpu_custom_call.1} parent=0
    _
  %s8 = ssub.s32 1, %s6
  %s9 = scalar_select 0, %s8, %s6
  $region1: #{tpu_custom_call.1} parent=0
    #allocation3 [shape = 'u8[1024]{0}', space=vmem, size = 0x400, scoped, tag = 'input window, operand 0']
    #allocation4 [shape = 's32[2]{0}', space=sflag, size = 0x8, scoped, tag = 'scoped memory for tpu_custom_call.1']
    #allocation5 [shape = 's32[2]{0}', space=sflag, size = 0x8, scoped, tag = 'scoped memory for tpu_custom_call.1']
    #allocation6 [shape = 'u8[131072]{0}', space=vmem, size = 0x20000, scoped, tag = 'input window, operand 1, single buffered']
    #allocation7 [shape = 's32[1]{0}', space=sflag, size = 0x4, scoped, tag = 'scoped memory for tpu_custom_call.1']
    #allocation8 [shape = 'u8[512]{0}', space=vmem, size = 0x400, scoped, tag = 'input window, operand 2, single buffered']
    #allocation9 [shape = 'u8[73728]{0}', space=vmem, size = 0x12000, scoped, tag = 'input window, operand 3, single buffered']
    #allocation10 [shape = 's32[1]{0}', space=sflag, size = 0x4, scoped, tag = 'scoped memory for tpu_custom_call.1']
    #allocation11 [shape = 'u8[512]{0}', space=vmem, size = 0x400, scoped, tag = 'input window, operand 4, single buffered']
    #allocation12 [shape = 'u8[32768]{0}', space=vmem, size = 0x8000, scoped, tag = 'output window, operand 0']
    %10 = vsyncpa [#allocation4], 0
    %s11 = scalar_lea.sflag [#allocation4], 1
    %12 = vsyncpa %s11, 0
    %13 = vsyncpa [#allocation7], 0
    %14 = vsyncpa [#allocation10], 0
    %15 = vsyncpa [#allocation5], 0
    %s16 = scalar_lea.sflag [#allocation5], 1
    %17 = vsyncpa %s16, 0
    loop: start=0, step=1, limit=4
    $region2: #{tpu_custom_call.1} parent=1 // loop_pre_header
      _
    $region3: #{tpu_custom_call.1} parent=1 // loop_header
      %s19 = sphi 0, %s23
      %p20 = scmp.ge.s32.totalorder %s19, 4
      %s29 = sphi 0, %s31
      %s32 = sphi 0, %s29
      %s33 = sphi 0, %s32
      %s49 = sphi 0, %s33
      %s53 = sphi 0, %s53
      %s55 = sphi 0, %s53
      %s56 = sphi 0, %s55
      %s70 = sphi 0, %s56
      %s74 = sphi 0, %s74
      %s76 = sphi 0, %s74
      %s77 = sphi 0, %s76
      %s91 = sphi 0, %s77
      %s95 = sphi 0, %s95
      %s97 = sphi 0, %s95
      %s98 = sphi 0, %s97
      %s112 = sphi 0, %s98
      %s116 = sphi 0, %s116
      %s118 = sphi 0, %s116
      %s119 = sphi 0, %s118
      %s133 = sphi 0, %s119
      %s139 = sphi 0, %s141
      %s142 = sphi 0, %s139
      %s143 = sphi 0, %s142
      %s159 = sphi 0, %s143
    $region4: #{tpu_custom_call.1} parent=1 // loop_header_branch
      %22 = sbr.rel (%p20) target = $region8
    $region5: #{tpu_custom_call.1} parent=1 // loop_body
      %s24 = ssub.s32 %s19, 1
      %s25 = ssub.s32 %s19, 2
      %s26 = sadd.s32 %s19, 1
      %s27 = ssub.s32 %s19, %s26
      %p28 = scmp.eq.s32.totalorder %s27, 0
      %s30 = sadd.s32 %s29, 1
      %s31 = scalar_select %p28, %s29, %s30
      %p34 = pneg %p28
      %p35 = scmp.eq.s32.totalorder %s19, 1
      %p36 = por %p34, %p35
      %p37 = scmp.ne.s32.totalorder %s29, %s32
      %p38 = scmp.eq.s32.totalorder %s19, 0
      %p39 = por %p37, %p38
      %p40 = scmp.ne.s32.totalorder %s29, %s32
      %p41 = scmp.eq.s32.totalorder %s24, 1
      %p42 = por %p40, %p41
      %p43 = scmp.ne.s32.totalorder %s32, %s33
      %p44 = scmp.eq.s32.totalorder %s24, 0
      %p45 = por %p43, %p44
      %p46 = scmp.ne.s32.totalorder %s32, %s33
      %p47 = scmp.eq.s32.totalorder %s25, 1
      %p48 = por %p46, %p47
      %p50 = scmp.ne.s32.totalorder %s33, %s49
      %p51 = scmp.eq.s32.totalorder %s25, 0
      %p52 = por %p50, %p51
      %s54 = sadd.s32 %s53, 1
      %p57 = scmp.eq.s32.totalorder %s19, 1
      %p58 = scmp.ne.s32.totalorder %s53, %s55
      %p59 = scmp.eq.s32.totalorder %s19, 0
      %p60 = por %p58, %p59
      %p61 = scmp.ne.s32.totalorder %s53, %s55
      %p62 = scmp.eq.s32.totalorder %s24, 1
      %p63 = por %p61, %p62
      %p64 = scmp.ne.s32.totalorder %s55, %s56
      %p65 = scmp.eq.s32.totalorder %s24, 0
      %p66 = por %p64, %p65
      %p67 = scmp.ne.s32.totalorder %s55, %s56
      %p68 = scmp.eq.s32.totalorder %s25, 1
      %p69 = por %p67, %p68
      %p71 = scmp.ne.s32.totalorder %s56, %s70
      %p72 = scmp.eq.s32.totalorder %s25, 0
      %p73 = por %p71, %p72
      %s75 = sadd.s32 %s74, 1
      %p78 = scmp.eq.s32.totalorder %s19, 1
      %p79 = scmp.ne.s32.totalorder %s74, %s76
      %p80 = scmp.eq.s32.totalorder %s19, 0
      %p81 = por %p79, %p80
      %p82 = scmp.ne.s32.totalorder %s74, %s76
      %p83 = scmp.eq.s32.totalorder %s24, 1
      %p84 = por %p82, %p83
      %p85 = scmp.ne.s32.totalorder %s76, %s77
      %p86 = scmp.eq.s32.totalorder %s24, 0
      %p87 = por %p85, %p86
      %p88 = scmp.ne.s32.totalorder %s76, %s77
      %p89 = scmp.eq.s32.totalorder %s25, 1
      %p90 = por %p88, %p89
      %p92 = scmp.ne.s32.totalorder %s77, %s91
      %p93 = scmp.eq.s32.totalorder %s25, 0
      %p94 = por %p92, %p93
      %s96 = sadd.s32 %s95, 1
      %p99 = scmp.eq.s32.totalorder %s19, 1
      %p100 = scmp.ne.s32.totalorder %s95, %s97
      %p101 = scmp.eq.s32.totalorder %s19, 0
      %p102 = por %p100, %p101
      %p103 = scmp.ne.s32.totalorder %s95, %s97
      %p104 = scmp.eq.s32.totalorder %s24, 1
      %p105 = por %p103, %p104
      %p106 = scmp.ne.s32.totalorder %s97, %s98
      %p107 = scmp.eq.s32.totalorder %s24, 0
      %p108 = por %p106, %p107
      %p109 = scmp.ne.s32.totalorder %s97, %s98
      %p110 = scmp.eq.s32.totalorder %s25, 1
      %p111 = por %p109, %p110
      %p113 = scmp.ne.s32.totalorder %s98, %s112
      %p114 = scmp.eq.s32.totalorder %s25, 0
      %p115 = por %p113, %p114
      %s117 = sadd.s32 %s116, 1
      %p120 = scmp.eq.s32.totalorder %s19, 1
      %p121 = scmp.ne.s32.totalorder %s116, %s118
      %p122 = scmp.eq.s32.totalorder %s19, 0
      %p123 = por %p121, %p122
      %p124 = scmp.ne.s32.totalorder %s116, %s118
      %p125 = scmp.eq.s32.totalorder %s24, 1
      %p126 = por %p124, %p125
      %p127 = scmp.ne.s32.totalorder %s118, %s119
      %p128 = scmp.eq.s32.totalorder %s24, 0
      %p129 = por %p127, %p128
      %p130 = scmp.ne.s32.totalorder %s118, %s119
      %p131 = scmp.eq.s32.totalorder %s25, 1
      %p132 = por %p130, %p131
      %p134 = scmp.ne.s32.totalorder %s119, %s133
      %p135 = scmp.eq.s32.totalorder %s25, 0
      %p136 = por %p134, %p135
      %s137 = ssub.s32 %s19, %s26
      %p138 = scmp.eq.s32.totalorder %s137, 0
      %s140 = sadd.s32 %s139, 1
      %s141 = scalar_select %p138, %s139, %s140
      %p144 = pneg %p138
      %p145 = scmp.eq.s32.totalorder %s19, 1
      %p146 = por %p144, %p145
      %p147 = scmp.ne.s32.totalorder %s139, %s142
      %p148 = scmp.eq.s32.totalorder %s19, 0
      %p149 = por %p147, %p148
      %p150 = scmp.ne.s32.totalorder %s139, %s142
      %p151 = scmp.eq.s32.totalorder %s24, 1
      %p152 = por %p150, %p151
      %p153 = scmp.ne.s32.totalorder %s142, %s143
      %p154 = scmp.eq.s32.totalorder %s24, 0
      %p155 = por %p153, %p154
      %p156 = scmp.ne.s32.totalorder %s142, %s143
      %p157 = scmp.eq.s32.totalorder %s25, 1
      %p158 = por %p156, %p157
      %p160 = scmp.ne.s32.totalorder %s143, %s159
      %p161 = scmp.eq.s32.totalorder %s25, 0
      %p162 = por %p160, %p161
      %p163 = scmp.le.s32.totalorder 1, %s19
      %p164 = scmp.lt.s32.totalorder %s19, 3
      %p165 = pnand %p163, %p164
      %p166 = pneg %p165
      // Predicated region
      $region9: #{tpu_custom_call.1} parent=5 // pred_check
        _
      $region10: #{tpu_custom_call.1} parent=5 // pred_check_branch
        %168 = sbr.rel (%p165) target = $region12
      $region11: #{tpu_custom_call.1} parent=5 // pred_region
        %s169 = ssub.s32 %s19, 1
        // Predicated region
        $region13: #{tpu_custom_call.1} parent=11 // pred_check
          %p170 = pneg %p66
        $region14: #{tpu_custom_call.1} parent=11 // pred_check_branch
          %172 = sbr.rel (%p170) target = $region16
        $region15: #{tpu_custom_call.1} parent=11 // pred_region
          %s174 = ssub.s32 4096, 4096
          %175 = vsyncadd [#allocation7], %s174
          %s176 = sshll.u32 [#allocation6], 4
          %s177 = int_to_ptr.vmem [resolvable:$true] %s176
          %182 = dma.hbm_to_vmem [thread:$0]  %s1, 4096, %s177, [#allocation7], 64, 64, 4
        $region16: #{tpu_custom_call.1} parent=11 // pred_fallthru
          _
        // Predicated region
        $region17: #{tpu_custom_call.1} parent=11 // pred_check
          %p183 = pneg %p87
        $region18: #{tpu_custom_call.1} parent=11 // pred_check_branch
          %185 = sbr.rel (%p183) target = $region20
        $region19: #{tpu_custom_call.1} parent=11 // pred_region
          %s187 = ssub.s32 16, 16
          %188 = vsyncadd [#allocation7], %s187
          %s190 = sshll.u32 [#allocation8], 4
          %s191 = int_to_ptr.vmem [resolvable:$true] %s190
          %193 = dma.hbm_to_vmem [thread:$0]  %s2, 16, %s191, [#allocation7]
        $region20: #{tpu_custom_call.1} parent=11 // pred_fallthru
          _
        // Predicated region
        $region21: #{tpu_custom_call.1} parent=11 // pred_check
          %p194 = pneg %p108
        $region22: #{tpu_custom_call.1} parent=11 // pred_check_branch
          %196 = sbr.rel (%p194) target = $region24
        $region23: #{tpu_custom_call.1} parent=11 // pred_region
          %s198 = ssub.s32 2304, 2304
          %199 = vsyncadd [#allocation10], %s198
          %s200 = sshll.u32 [#allocation9], 4
          %s201 = int_to_ptr.vmem [resolvable:$true] %s200
          %206 = dma.hbm_to_vmem [thread:$0]  %s3, 2304, %s201, [#allocation10], 64, 64, 4
        $region24: #{tpu_custom_call.1} parent=11 // pred_fallthru
          _
        // Predicated region
        $region25: #{tpu_custom_call.1} parent=11 // pred_check
          %p207 = pneg %p129
        $region26: #{tpu_custom_call.1} parent=11 // pred_check_branch
          %209 = sbr.rel (%p207) target = $region28
        $region27: #{tpu_custom_call.1} parent=11 // pred_region
          %s211 = ssub.s32 16, 16
          %212 = vsyncadd [#allocation10], %s211
          %s214 = sshll.u32 [#allocation11], 4
          %s215 = int_to_ptr.vmem [resolvable:$true] %s214
          %217 = dma.hbm_to_vmem [thread:$0]  %s4, 16, %s215, [#allocation10]
        $region28: #{tpu_custom_call.1} parent=11 // pred_fallthru
          _
      $region12: #{tpu_custom_call.1} parent=5 // pred_fallthru
        _
      %p218 = scmp.lt.s32.totalorder %s19, 2
      // Predicated region
      $region29: #{tpu_custom_call.1} parent=5 // pred_check
        %p219 = pneg %p218
      $region30: #{tpu_custom_call.1} parent=5 // pred_check_branch
        %221 = sbr.rel (%p219) target = $region32
      $region31: #{tpu_custom_call.1} parent=5 // pred_region
        // Predicated region
        $region33: #{tpu_custom_call.1} parent=31 // pred_check
          %p222 = pneg %p39
        $region34: #{tpu_custom_call.1} parent=31 // pred_check_branch
          %224 = sbr.rel (%p222) target = $region36
        $region35: #{tpu_custom_call.1} parent=31 // pred_region
          %s225 = sand.u32 %s29, 1
          %s226 = scalar_lea.sflag [#allocation4], %s225
          %s227 = sand.u32 %s29, 1
          %s228 = scalar_lea.vmem [#allocation3], %s227
          %s230 = ssub.s32 16, 16
          %231 = vsyncadd %s226, %s230
          %s232 = smul.addr %s19, 16
          %s233 = scalar_lea.hbm %s0, %s232
          %s235 = sshll.u32 %s228, 4
          %s236 = int_to_ptr.vmem [resolvable:$true] %s235
          %238 = dma.hbm_to_vmem [thread:$0]  %s233, 16, %s236, %s226
        $region36: #{tpu_custom_call.1} parent=31 // pred_fallthru
          _
      $region32: #{tpu_custom_call.1} parent=5 // pred_fallthru
        _
      %p239 = scmp.le.s32.totalorder 1, %s19
      %p240 = scmp.lt.s32.totalorder %s19, 3
      %p241 = pnand %p239, %p240
      %p242 = pneg %p241
      // Predicated region
      $region37: #{tpu_custom_call.1} parent=5 // pred_check
        _
      $region38: #{tpu_custom_call.1} parent=5 // pred_check_branch
        %244 = sbr.rel (%p241) target = $region40
      $region39: #{tpu_custom_call.1} parent=5 // pred_region
        %s245 = ssub.s32 %s19, 1
        %s246 = sand.u32 %s32, 1
        %s247 = scalar_lea.sflag [#allocation4], %s246
        %s248 = sand.u32 %s32, 1
        %s249 = scalar_lea.vmem [#allocation3], %s248
        // Predicated region
        $region41: #{tpu_custom_call.1} parent=39 // pred_check
          %p250 = pneg %p45
        $region42: #{tpu_custom_call.1} parent=39 // pred_check_branch
          %252 = sbr.rel (%p250) target = $region44
        $region43: #{tpu_custom_call.1} parent=39 // pred_region
          %253 = dma.done %s247, 16
        $region44: #{tpu_custom_call.1} parent=39 // pred_fallthru
          _
        // Predicated region
        $region45: #{tpu_custom_call.1} parent=39 // pred_check
          %p254 = pneg %p66
        $region46: #{tpu_custom_call.1} parent=39 // pred_check_branch
          %256 = sbr.rel (%p254) target = $region48
        $region47: #{tpu_custom_call.1} parent=39 // pred_region
          %257 = dma.done [#allocation7], 4096
        $region48: #{tpu_custom_call.1} parent=39 // pred_fallthru
          _
        // Predicated region
        $region49: #{tpu_custom_call.1} parent=39 // pred_check
          %p258 = pneg %p87
        $region50: #{tpu_custom_call.1} parent=39 // pred_check_branch
          %260 = sbr.rel (%p258) target = $region52
        $region51: #{tpu_custom_call.1} parent=39 // pred_region
          %261 = dma.done [#allocation7], 16
        $region52: #{tpu_custom_call.1} parent=39 // pred_fallthru
          _
        // Predicated region
        $region53: #{tpu_custom_call.1} parent=39 // pred_check
          %p262 = pneg %p108
        $region54: #{tpu_custom_call.1} parent=39 // pred_check_branch
          %264 = sbr.rel (%p262) target = $region56
        $region55: #{tpu_custom_call.1} parent=39 // pred_region
          %265 = dma.done [#allocation10], 2304
        $region56: #{tpu_custom_call.1} parent=39 // pred_fallthru
          _
        // Predicated region
        $region57: #{tpu_custom_call.1} parent=39 // pred_check
          %p266 = pneg %p129
        $region58: #{tpu_custom_call.1} parent=39 // pred_check_branch
          %268 = sbr.rel (%p266) target = $region60
        $region59: #{tpu_custom_call.1} parent=39 // pred_region
          %269 = dma.done [#allocation10], 16
        $region60: #{tpu_custom_call.1} parent=39 // pred_fallthru
          _
        %s270 = sand.u32 %s32, 1
        %s271 = scalar_lea.sflag [#allocation4], %s270
        %s272 = sand.u32 %s32, 1
        %s273 = scalar_lea.vmem [#allocation3], %s272
        %p274 = pneg %p45
        %p275 = pneg %p42
        %p276 = pneg %p66
        %p277 = pneg %p63
        %p278 = pneg %p87
        %p279 = pneg %p84
        %p280 = pneg %p108
        %p281 = pneg %p105
        %p282 = pneg %p129
        %p283 = pneg %p126
        %p284 = pneg %p155
        %p285 = pneg %p152
        %s286 = sand.u32 %s142, 1
        %s287 = scalar_lea.sflag [#allocation5], %s286
        %s288 = sand.u32 %s142, 1
        %s289 = smul.addr %s288, 32
        %s290 = scalar_lea.vmem [#allocation12], %s289
        %vm292 = vcmask 259072
        %293 = vst.msk [vmem:[#allocation2] sm:$0x3f] %vm292, 0.0
        %s294 = scalar_lea.vmem [#allocation2], 40
        %295 = vst.msk [vmem:[%s294] sm:$0x3f] %vm292, 0.0
        %vm296 = vcmask 253952
        %297 = vst.msk [vmem:[#allocation2] sm:$0x1] %vm296, 0.0
        %298 = vst.msk [vmem:[#allocation2 + $0x8] sm:$0x1] %vm296, 0.0
        %299 = vst.msk [vmem:[#allocation2 + $0x10] sm:$0x1] %vm296, 0.0
        %300 = vst.msk [vmem:[#allocation2 + $0x18] sm:$0x1] %vm296, 0.0
        %301 = vst.msk [vmem:[#allocation2 + $0x20] sm:$0x1] %vm296, 0.0
        %302 = vst.msk [vmem:[#allocation2 + $0x28] sm:$0x1] %vm296, 0.0
        %303 = vst.msk [vmem:[#allocation2 + $0x5] sm:$0x1] %vm296, 0.0
        %304 = vst.msk [vmem:[#allocation2 + $0xd] sm:$0x1] %vm296, 0.0
        %305 = vst.msk [vmem:[#allocation2 + $0x15] sm:$0x1] %vm296, 0.0
        %306 = vst.msk [vmem:[#allocation2 + $0x1d] sm:$0x1] %vm296, 0.0
        %307 = vst.msk [vmem:[#allocation2 + $0x25] sm:$0x1] %vm296, 0.0
        %308 = vst.msk [vmem:[#allocation2 + $0x2d] sm:$0x1] %vm296, 0.0
        %v309 = vld [vmem:[%s249] sm:$0x1]
        %v310 = vmul.f32 %v309, %v309
        %v311 = vsel %vm296, %v310, 0.0
        %312 = vadd.xlane.f32.xlu0 %v311
        %v313 = vpop.xlane.xlu0 %312
        %v314 = vrcp.pop 32.0
        %v315 = vmul.f32 %v313, %v314
        %v316 = vadd.f32 %v315, 1e-08
        %v317 = vrsqrt.pop %v316
        %v318 = vmul.f32 %v309, %v317
        %v319 = vpack.c.bf16 %v318, %v318
        %v320 = vld [vmem:[#allocation6] sm:$0xf]
        %v321 = vld [vmem:[#allocation6 + $0x4] sm:$0xf]
        %v322 = vld [vmem:[#allocation6 + $0x8] sm:$0xf]
        %v323 = vld [vmem:[#allocation6 + $0xc] sm:$0xf]
        %v324 = vld [vmem:[#allocation8] sm:$0x1]
        %v329 = vunpack.c.l.b16 %v320
        %v330 = vunpack.c.l.b16 %v321
        %v331 = vunpack.c.l.b16 %v322
        %v332 = vunpack.c.l.b16 %v323
        %v333 = vpack.c.b16 %v330, %v329
        %v334 = vpack.c.b16 %v332, %v331
        %vm337 = vcmask 261120
        %v339 = vsel %vm337, %v319, 0
        %341 = vmatprep.subr.bf16.mxu0 0
        %342 = vmatpush1.bf16.msra.mxu0 %v333
        %343 = vmatprep.subr.bf16.mxu0 0
        %344 = vmatpush1.bf16.msra.mxu0 %v334
        %345 = vmatprep.subr.bf16.mxu0 0
        %346 = vmatpush1.bf16.msra.mxu0 0
        %347 = vmatprep.subr.bf16.mxu0 0
        %348 = vmatpush1.bf16.msra.mxu0 0
        %349 = vmatprep.subr.bf16.mxu0 0
        %350 = vmatpush1.bf16.msra.mxu0 0
        %351 = vmatprep.subr.bf16.mxu0 0
        %352 = vmatpush1.bf16.msra.mxu0 0
        %353 = vmatprep.subr.bf16.mxu0 0
        %354 = vmatpush1.bf16.msra.mxu0 0
        %355 = vmatprep.subr.bf16.mxu0 0
        %356 = vmatpush1.bf16.msra.mxu0 0
        %357 = vmatprep.subr.bf16.mxu0 0
        %358 = vmatpush1.bf16.msra.mxu0 0
        %359 = vmatprep.subr.bf16.mxu0 0
        %360 = vmatpush1.bf16.msra.mxu0 0
        %361 = vmatprep.subr.bf16.mxu0 0
        %362 = vmatpush1.bf16.msra.mxu0 0
        %363 = vmatprep.subr.bf16.mxu0 0
        %364 = vmatpush1.bf16.msra.mxu0 0
        %365 = vmatprep.subr.bf16.mxu0 0
        %366 = vmatpush1.bf16.msra.mxu0 0
        %367 = vmatprep.subr.bf16.mxu0 0
        %368 = vmatpush1.bf16.msra.mxu0 0
        %369 = vmatprep.subr.bf16.mxu0 0
        %370 = vmatpush1.bf16.msra.mxu0 0
        %371 = vmatprep.subr.bf16.mxu0 0
        %372 = vmatpush1.bf16.msra.mxu0 0
        %373 = vmatprep.mubr.bf16.mxu0 0
        %374 = vmatmul.mubr.bf16.gmra.mrb[0].mxu0 %v339
        %v375 = vpop.f32.mrb[0].mxu0
        %v376 = vadd.f32 %v324, %v375
        %v377 = vpop.f32.mrb[0].mxu0
        %v378 = vpop.f32.mrb[0].mxu0
        %v379 = vpop.f32.mrb[0].mxu0
        %380 = vdwg.mxu0
        %vm381 = vcmp.gt.f32.partialorder %v376, 0.0
        %v382 = vmul.f32 %v376, 0.2
        %v383 = vsel %vm381, %v376, %v382
        %s384 = scalar_lea.vmem [#allocation2], 8
        %385 = vst.msk [vmem:[%s384 + $0x1] sm:$0x1] %vm296, %v383
        %s386 = scalar_lea.vmem [#allocation6], 16
        %v387 = vld [vmem:[%s386] sm:$0xf]
        %v388 = vld [vmem:[%s386 + $0x4] sm:$0xf]
        %v389 = vld [vmem:[%s386 + $0x8] sm:$0xf]
        %v390 = vld [vmem:[%s386 + $0xc] sm:$0xf]
        %v391 = vld [vmem:[#allocation8] sm:$0x1]
        %v396 = vunpack.c.l.b16 %v387
        %v397 = vunpack.c.l.b16 %v388
        %v398 = vunpack.c.l.b16 %v389
        %v399 = vunpack.c.l.b16 %v390
        %v400 = vpack.c.b16 %v397, %v396
        %v401 = vpack.c.b16 %v399, %v398
        %404 = vmatprep.subr.bf16.mxu0 0
        %405 = vmatpush1.bf16.msra.mxu0 %v400
        %406 = vmatprep.subr.bf16.mxu0 0
        %407 = vmatpush1.bf16.msra.mxu0 %v401
        %408 = vmatprep.subr.bf16.mxu0 0
        %409 = vmatpush1.bf16.msra.mxu0 0
        %410 = vmatprep.subr.bf16.mxu0 0
        %411 = vmatpush1.bf16.msra.mxu0 0
        %412 = vmatprep.subr.bf16.mxu0 0
        %413 = vmatpush1.bf16.msra.mxu0 0
        %414 = vmatprep.subr.bf16.mxu0 0
        %415 = vmatpush1.bf16.msra.mxu0 0
        %416 = vmatprep.subr.bf16.mxu0 0
        %417 = vmatpush1.bf16.msra.mxu0 0
        %418 = vmatprep.subr.bf16.mxu0 0
        %419 = vmatpush1.bf16.msra.mxu0 0
        %420 = vmatprep.subr.bf16.mxu0 0
        %421 = vmatpush1.bf16.msra.mxu0 0
        %422 = vmatprep.subr.bf16.mxu0 0
        %423 = vmatpush1.bf16.msra.mxu0 0
        %424 = vmatprep.subr.bf16.mxu0 0
        %425 = vmatpush1.bf16.msra.mxu0 0
        %426 = vmatprep.subr.bf16.mxu0 0
        %427 = vmatpush1.bf16.msra.mxu0 0
        %428 = vmatprep.subr.bf16.mxu0 0
        %429 = vmatpush1.bf16.msra.mxu0 0
        %430 = vmatprep.subr.bf16.mxu0 0
        %431 = vmatpush1.bf16.msra.mxu0 0
        %432 = vmatprep.subr.bf16.mxu0 0
        %433 = vmatpush1.bf16.msra.mxu0 0
        %434 = vmatprep.subr.bf16.mxu0 0
        %435 = vmatpush1.bf16.msra.mxu0 0
        %436 = vmatprep.mubr.bf16.mxu0 0
        %437 = vmatmul.mubr.bf16.gmra.mrb[0].mxu0 %v339
        %v438 = vpop.f32.mrb[0].mxu0
        %v439 = vadd.f32 %v391, %v438
        %v440 = vpop.f32.mrb[0].mxu0
        %v441 = vpop.f32.mrb[0].mxu0
        %v442 = vpop.f32.mrb[0].mxu0
        %443 = vdwg.mxu0
        %vm444 = vcmp.gt.f32.partialorder %v439, 0.0
        %v445 = vmul.f32 %v439, 0.2
        %v446 = vsel %vm444, %v439, %v445
        %447 = vst.msk [vmem:[%s384 + $0x2] sm:$0x1] %vm296, %v446
        %s448 = scalar_lea.vmem [#allocation6], 32
        %v449 = vld [vmem:[%s448] sm:$0xf]
        %v450 = vld [vmem:[%s448 + $0x4] sm:$0xf]
        %v451 = vld [vmem:[%s448 + $0x8] sm:$0xf]
        %v452 = vld [vmem:[%s448 + $0xc] sm:$0xf]
        %v453 = vld [vmem:[#allocation8] sm:$0x1]
        %v458 = vunpack.c.l.b16 %v449
        %v459 = vunpack.c.l.b16 %v450
        %v460 = vunpack.c.l.b16 %v451
        %v461 = vunpack.c.l.b16 %v452
        %v462 = vpack.c.b16 %v459, %v458
        %v463 = vpack.c.b16 %v461, %v460
        %466 = vmatprep.subr.bf16.mxu0 0
        %467 = vmatpush1.bf16.msra.mxu0 %v462
        %468 = vmatprep.subr.bf16.mxu0 0
        %469 = vmatpush1.bf16.msra.mxu0 %v463
        %470 = vmatprep.subr.bf16.mxu0 0
        %471 = vmatpush1.bf16.msra.mxu0 0
        %472 = vmatprep.subr.bf16.mxu0 0
        %473 = vmatpush1.bf16.msra.mxu0 0
        %474 = vmatprep.subr.bf16.mxu0 0
        %475 = vmatpush1.bf16.msra.mxu0 0
        %476 = vmatprep.subr.bf16.mxu0 0
        %477 = vmatpush1.bf16.msra.mxu0 0
        %478 = vmatprep.subr.bf16.mxu0 0
        %479 = vmatpush1.bf16.msra.mxu0 0
        %480 = vmatprep.subr.bf16.mxu0 0
        %481 = vmatpush1.bf16.msra.mxu0 0
        %482 = vmatprep.subr.bf16.mxu0 0
        %483 = vmatpush1.bf16.msra.mxu0 0
        %484 = vmatprep.subr.bf16.mxu0 0
        %485 = vmatpush1.bf16.msra.mxu0 0
        %486 = vmatprep.subr.bf16.mxu0 0
        %487 = vmatpush1.bf16.msra.mxu0 0
        %488 = vmatprep.subr.bf16.mxu0 0
        %489 = vmatpush1.bf16.msra.mxu0 0
        %490 = vmatprep.subr.bf16.mxu0 0
        %491 = vmatpush1.bf16.msra.mxu0 0
        %492 = vmatprep.subr.bf16.mxu0 0
        %493 = vmatpush1.bf16.msra.mxu0 0
        %494 = vmatprep.subr.bf16.mxu0 0
        %495 = vmatpush1.bf16.msra.mxu0 0
        %496 = vmatprep.subr.bf16.mxu0 0
        %497 = vmatpush1.bf16.msra.mxu0 0
        %498 = vmatprep.mubr.bf16.mxu0 0
        %499 = vmatmul.mubr.bf16.gmra.mrb[0].mxu0 %v339
        %v500 = vpop.f32.mrb[0].mxu0
        %v501 = vadd.f32 %v453, %v500
        %v502 = vpop.f32.mrb[0].mxu0
        %v503 = vpop.f32.mrb[0].mxu0
        %v504 = vpop.f32.mrb[0].mxu0
        %505 = vdwg.mxu0
        %vm506 = vcmp.gt.f32.partialorder %v501, 0.0
        %v507 = vmul.f32 %v501, 0.2
        %v508 = vsel %vm506, %v501, %v507
        %509 = vst.msk [vmem:[%s384 + $0x3] sm:$0x1] %vm296, %v508
        %s510 = scalar_lea.vmem [#allocation6], 48
        %v511 = vld [vmem:[%s510] sm:$0xf]
        %v512 = vld [vmem:[%s510 + $0x4] sm:$0xf]
        %v513 = vld [vmem:[%s510 + $0x8] sm:$0xf]
        %v514 = vld [vmem:[%s510 + $0xc] sm:$0xf]
        %v515 = vld [vmem:[#allocation8] sm:$0x1]
        %v520 = vunpack.c.l.b16 %v511
        %v521 = vunpack.c.l.b16 %v512
        %v522 = vunpack.c.l.b16 %v513
        %v523 = vunpack.c.l.b16 %v514
        %v524 = vpack.c.b16 %v521, %v520
        %v525 = vpack.c.b16 %v523, %v522
        %528 = vmatprep.subr.bf16.mxu0 0
        %529 = vmatpush1.bf16.msra.mxu0 %v524
        %530 = vmatprep.subr.bf16.mxu0 0
        %531 = vmatpush1.bf16.msra.mxu0 %v525
        %532 = vmatprep.subr.bf16.mxu0 0
        %533 = vmatpush1.bf16.msra.mxu0 0
        %534 = vmatprep.subr.bf16.mxu0 0
        %535 = vmatpush1.bf16.msra.mxu0 0
        %536 = vmatprep.subr.bf16.mxu0 0
        %537 = vmatpush1.bf16.msra.mxu0 0
        %538 = vmatprep.subr.bf16.mxu0 0
        %539 = vmatpush1.bf16.msra.mxu0 0
        %540 = vmatprep.subr.bf16.mxu0 0
        %541 = vmatpush1.bf16.msra.mxu0 0
        %542 = vmatprep.subr.bf16.mxu0 0
        %543 = vmatpush1.bf16.msra.mxu0 0
        %544 = vmatprep.subr.bf16.mxu0 0
        %545 = vmatpush1.bf16.msra.mxu0 0
        %546 = vmatprep.subr.bf16.mxu0 0
        %547 = vmatpush1.bf16.msra.mxu0 0
        %548 = vmatprep.subr.bf16.mxu0 0
        %549 = vmatpush1.bf16.msra.mxu0 0
        %550 = vmatprep.subr.bf16.mxu0 0
        %551 = vmatpush1.bf16.msra.mxu0 0
        %552 = vmatprep.subr.bf16.mxu0 0
        %553 = vmatpush1.bf16.msra.mxu0 0
        %554 = vmatprep.subr.bf16.mxu0 0
        %555 = vmatpush1.bf16.msra.mxu0 0
        %556 = vmatprep.subr.bf16.mxu0 0
        %557 = vmatpush1.bf16.msra.mxu0 0
        %558 = vmatprep.subr.bf16.mxu0 0
        %559 = vmatpush1.bf16.msra.mxu0 0
        %560 = vmatprep.mubr.bf16.mxu0 0
        %561 = vmatmul.mubr.bf16.gmra.mrb[0].mxu0 %v339
        %v562 = vpop.f32.mrb[0].mxu0
        %v563 = vadd.f32 %v515, %v562
        %v564 = vpop.f32.mrb[0].mxu0
        %v565 = vpop.f32.mrb[0].mxu0
        %v566 = vpop.f32.mrb[0].mxu0
        %567 = vdwg.mxu0
        %vm568 = vcmp.gt.f32.partialorder %v563, 0.0
        %v569 = vmul.f32 %v563, 0.2
        %v570 = vsel %vm568, %v563, %v569
        %571 = vst.msk [vmem:[%s384 + $0x4] sm:$0x1] %vm296, %v570
        %s572 = scalar_lea.vmem [#allocation6], 64
        %v573 = vld [vmem:[%s572] sm:$0xf]
        %v574 = vld [vmem:[%s572 + $0x4] sm:$0xf]
        %v575 = vld [vmem:[%s572 + $0x8] sm:$0xf]
        %v576 = vld [vmem:[%s572 + $0xc] sm:$0xf]
        %v577 = vld [vmem:[#allocation8] sm:$0x1]
        %v582 = vunpack.c.l.b16 %v573
        %v583 = vunpack.c.l.b16 %v574
        %v584 = vunpack.c.l.b16 %v575
        %v585 = vunpack.c.l.b16 %v576
        %v586 = vpack.c.b16 %v583, %v582
        %v587 = vpack.c.b16 %v585, %v584
        %590 = vmatprep.subr.bf16.mxu0 0
        %591 = vmatpush1.bf16.msra.mxu0 %v586
        %592 = vmatprep.subr.bf16.mxu0 0
        %593 = vmatpush1.bf16.msra.mxu0 %v587
        %594 = vmatprep.subr.bf16.mxu0 0
        %595 = vmatpush1.bf16.msra.mxu0 0
        %596 = vmatprep.subr.bf16.mxu0 0
        %597 = vmatpush1.bf16.msra.mxu0 0
        %598 = vmatprep.subr.bf16.mxu0 0
        %599 = vmatpush1.bf16.msra.mxu0 0
        %600 = vmatprep.subr.bf16.mxu0 0
        %601 = vmatpush1.bf16.msra.mxu0 0
        %602 = vmatprep.subr.bf16.mxu0 0
        %603 = vmatpush1.bf16.msra.mxu0 0
        %604 = vmatprep.subr.bf16.mxu0 0
        %605 = vmatpush1.bf16.msra.mxu0 0
        %606 = vmatprep.subr.bf16.mxu0 0
        %607 = vmatpush1.bf16.msra.mxu0 0
        %608 = vmatprep.subr.bf16.mxu0 0
        %609 = vmatpush1.bf16.msra.mxu0 0
        %610 = vmatprep.subr.bf16.mxu0 0
        %611 = vmatpush1.bf16.msra.mxu0 0
        %612 = vmatprep.subr.bf16.mxu0 0
        %613 = vmatpush1.bf16.msra.mxu0 0
        %614 = vmatprep.subr.bf16.mxu0 0
        %615 = vmatpush1.bf16.msra.mxu0 0
        %616 = vmatprep.subr.bf16.mxu0 0
        %617 = vmatpush1.bf16.msra.mxu0 0
        %618 = vmatprep.subr.bf16.mxu0 0
        %619 = vmatpush1.bf16.msra.mxu0 0
        %620 = vmatprep.subr.bf16.mxu0 0
        %621 = vmatpush1.bf16.msra.mxu0 0
        %622 = vmatprep.mubr.bf16.mxu0 0
        %623 = vmatmul.mubr.bf16.gmra.mrb[0].mxu0 %v339
        %v624 = vpop.f32.mrb[0].mxu0
        %v625 = vadd.f32 %v577, %v624
        %v626 = vpop.f32.mrb[0].mxu0
        %v627 = vpop.f32.mrb[0].mxu0
        %v628 = vpop.f32.mrb[0].mxu0
        %629 = vdwg.mxu0
        %vm630 = vcmp.gt.f32.partialorder %v625, 0.0
        %v631 = vmul.f32 %v625, 0.2
        %v632 = vsel %vm630, %v625, %v631
        %s633 = scalar_lea.vmem [#allocation2], 16
        %634 = vst.msk [vmem:[%s633 + $0x1] sm:$0x1] %vm296, %v632
        %s635 = scalar_lea.vmem [#allocation6], 80
        %v636 = vld [vmem:[%s635] sm:$0xf]
        %v637 = vld [vmem:[%s635 + $0x4] sm:$0xf]
        %v638 = vld [vmem:[%s635 + $0x8] sm:$0xf]
        %v639 = vld [vmem:[%s635 + $0xc] sm:$0xf]
        %v640 = vld [vmem:[#allocation8] sm:$0x1]
        %v645 = vunpack.c.l.b16 %v636
        %v646 = vunpack.c.l.b16 %v637
        %v647 = vunpack.c.l.b16 %v638
        %v648 = vunpack.c.l.b16 %v639
        %v649 = vpack.c.b16 %v646, %v645
        %v650 = vpack.c.b16 %v648, %v647
        %653 = vmatprep.subr.bf16.mxu0 0
        %654 = vmatpush1.bf16.msra.mxu0 %v649
        %655 = vmatprep.subr.bf16.mxu0 0
        %656 = vmatpush1.bf16.msra.mxu0 %v650
        %657 = vmatprep.subr.bf16.mxu0 0
        %658 = vmatpush1.bf16.msra.mxu0 0
        %659 = vmatprep.subr.bf16.mxu0 0
        %660 = vmatpush1.bf16.msra.mxu0 0
        %661 = vmatprep.subr.bf16.mxu0 0
        %662 = vmatpush1.bf16.msra.mxu0 0
        %663 = vmatprep.subr.bf16.mxu0 0
        %664 = vmatpush1.bf16.msra.mxu0 0
        %665 = vmatprep.subr.bf16.mxu0 0
        %666 = vmatpush1.bf16.msra.mxu0 0
        %667 = vmatprep.subr.bf16.mxu0 0
        %668 = vmatpush1.bf16.msra.mxu0 0
        %669 = vmatprep.subr.bf16.mxu0 0
        %670 = vmatpush1.bf16.msra.mxu0 0
        %671 = vmatprep.subr.bf16.mxu0 0
        %672 = vmatpush1.bf16.msra.mxu0 0
        %673 = vmatprep.subr.bf16.mxu0 0
        %674 = vmatpush1.bf16.msra.mxu0 0
        %675 = vmatprep.subr.bf16.mxu0 0
        %676 = vmatpush1.bf16.msra.mxu0 0
        %677 = vmatprep.subr.bf16.mxu0 0
        %678 = vmatpush1.bf16.msra.mxu0 0
        %679 = vmatprep.subr.bf16.mxu0 0
        %680 = vmatpush1.bf16.msra.mxu0 0
        %681 = vmatprep.subr.bf16.mxu0 0
        %682 = vmatpush1.bf16.msra.mxu0 0
        %683 = vmatprep.subr.bf16.mxu0 0
        %684 = vmatpush1.bf16.msra.mxu0 0
        %685 = vmatprep.mubr.bf16.mxu0 0
        %686 = vmatmul.mubr.bf16.gmra.mrb[0].mxu0 %v339
        %v687 = vpop.f32.mrb[0].mxu0
        %v688 = vadd.f32 %v640, %v687
        %v689 = vpop.f32.mrb[0].mxu0
        %v690 = vpop.f32.mrb[0].mxu0
        %v691 = vpop.f32.mrb[0].mxu0
        %692 = vdwg.mxu0
        %vm693 = vcmp.gt.f32.partialorder %v688, 0.0
        %v694 = vmul.f32 %v688, 0.2
        %v695 = vsel %vm693, %v688, %v694
        %696 = vst.msk [vmem:[%s633 + $0x2] sm:$0x1] %vm296, %v695
        %s697 = scalar_lea.vmem [#allocation6], 96
        %v698 = vld [vmem:[%s697] sm:$0xf]
        %v699 = vld [vmem:[%s697 + $0x4] sm:$0xf]
        %v700 = vld [vmem:[%s697 + $0x8] sm:$0xf]
        %v701 = vld [vmem:[%s697 + $0xc] sm:$0xf]
        %v702 = vld [vmem:[#allocation8] sm:$0x1]
        %v707 = vunpack.c.l.b16 %v698
        %v708 = vunpack.c.l.b16 %v699
        %v709 = vunpack.c.l.b16 %v700
        %v710 = vunpack.c.l.b16 %v701
        %v711 = vpack.c.b16 %v708, %v707
        %v712 = vpack.c.b16 %v710, %v709
        %715 = vmatprep.subr.bf16.mxu0 0
        %716 = vmatpush1.bf16.msra.mxu0 %v711
        %717 = vmatprep.subr.bf16.mxu0 0
        %718 = vmatpush1.bf16.msra.mxu0 %v712
        %719 = vmatprep.subr.bf16.mxu0 0
        %720 = vmatpush1.bf16.msra.mxu0 0
        %721 = vmatprep.subr.bf16.mxu0 0
        %722 = vmatpush1.bf16.msra.mxu0 0
        %723 = vmatprep.subr.bf16.mxu0 0
        %724 = vmatpush1.bf16.msra.mxu0 0
        %725 = vmatprep.subr.bf16.mxu0 0
        %726 = vmatpush1.bf16.msra.mxu0 0
        %727 = vmatprep.subr.bf16.mxu0 0
        %728 = vmatpush1.bf16.msra.mxu0 0
        %729 = vmatprep.subr.bf16.mxu0 0
        %730 = vmatpush1.bf16.msra.mxu0 0
        %731 = vmatprep.subr.bf16.mxu0 0
        %732 = vmatpush1.bf16.msra.mxu0 0
        %733 = vmatprep.subr.bf16.mxu0 0
        %734 = vmatpush1.bf16.msra.mxu0 0
        %735 = vmatprep.subr.bf16.mxu0 0
        %736 = vmatpush1.bf16.msra.mxu0 0
        %737 = vmatprep.subr.bf16.mxu0 0
        %738 = vmatpush1.bf16.msra.mxu0 0
        %739 = vmatprep.subr.bf16.mxu0 0
        %740 = vmatpush1.bf16.msra.mxu0 0
        %741 = vmatprep.subr.bf16.mxu0 0
        %742 = vmatpush1.bf16.msra.mxu0 0
        %743 = vmatprep.subr.bf16.mxu0 0
        %744 = vmatpush1.bf16.msra.mxu0 0
        %745 = vmatprep.subr.bf16.mxu0 0
        %746 = vmatpush1.bf16.msra.mxu0 0
        %747 = vmatprep.mubr.bf16.mxu0 0
        %748 = vmatmul.mubr.bf16.gmra.mrb[0].mxu0 %v339
        %v749 = vpop.f32.mrb[0].mxu0
        %v750 = vadd.f32 %v702, %v749
        %v751 = vpop.f32.mrb[0].mxu0
        %v752 = vpop.f32.mrb[0].mxu0
        %v753 = vpop.f32.mrb[0].mxu0
        %754 = vdwg.mxu0
        %vm755 = vcmp.gt.f32.partialorder %v750, 0.0
        %v756 = vmul.f32 %v750, 0.2
        %v757 = vsel %vm755, %v750, %v756
        %758 = vst.msk [vmem:[%s633 + $0x3] sm:$0x1] %vm296, %v757
        %s759 = scalar_lea.vmem [#allocation6], 112
        %v760 = vld [vmem:[%s759] sm:$0xf]
        %v761 = vld [vmem:[%s759 + $0x4] sm:$0xf]
        %v762 = vld [vmem:[%s759 + $0x8] sm:$0xf]
        %v763 = vld [vmem:[%s759 + $0xc] sm:$0xf]
        %v764 = vld [vmem:[#allocation8] sm:$0x1]
        %v769 = vunpack.c.l.b16 %v760
        %v770 = vunpack.c.l.b16 %v761
        %v771 = vunpack.c.l.b16 %v762
        %v772 = vunpack.c.l.b16 %v763
        %v773 = vpack.c.b16 %v770, %v769
        %v774 = vpack.c.b16 %v772, %v771
        %777 = vmatprep.subr.bf16.mxu0 0
        %778 = vmatpush1.bf16.msra.mxu0 %v773
        %779 = vmatprep.subr.bf16.mxu0 0
        %780 = vmatpush1.bf16.msra.mxu0 %v774
        %781 = vmatprep.subr.bf16.mxu0 0
        %782 = vmatpush1.bf16.msra.mxu0 0
        %783 = vmatprep.subr.bf16.mxu0 0
        %784 = vmatpush1.bf16.msra.mxu0 0
        %785 = vmatprep.subr.bf16.mxu0 0
        %786 = vmatpush1.bf16.msra.mxu0 0
        %787 = vmatprep.subr.bf16.mxu0 0
        %788 = vmatpush1.bf16.msra.mxu0 0
        %789 = vmatprep.subr.bf16.mxu0 0
        %790 = vmatpush1.bf16.msra.mxu0 0
        %791 = vmatprep.subr.bf16.mxu0 0
        %792 = vmatpush1.bf16.msra.mxu0 0
        %793 = vmatprep.subr.bf16.mxu0 0
        %794 = vmatpush1.bf16.msra.mxu0 0
        %795 = vmatprep.subr.bf16.mxu0 0
        %796 = vmatpush1.bf16.msra.mxu0 0
        %797 = vmatprep.subr.bf16.mxu0 0
        %798 = vmatpush1.bf16.msra.mxu0 0
        %799 = vmatprep.subr.bf16.mxu0 0
        %800 = vmatpush1.bf16.msra.mxu0 0
        %801 = vmatprep.subr.bf16.mxu0 0
        %802 = vmatpush1.bf16.msra.mxu0 0
        %803 = vmatprep.subr.bf16.mxu0 0
        %804 = vmatpush1.bf16.msra.mxu0 0
        %805 = vmatprep.subr.bf16.mxu0 0
        %806 = vmatpush1.bf16.msra.mxu0 0
        %807 = vmatprep.subr.bf16.mxu0 0
        %808 = vmatpush1.bf16.msra.mxu0 0
        %809 = vmatprep.mubr.bf16.mxu0 0
        %810 = vmatmul.mubr.bf16.gmra.mrb[0].mxu0 %v339
        %v811 = vpop.f32.mrb[0].mxu0
        %v812 = vadd.f32 %v764, %v811
        %v813 = vpop.f32.mrb[0].mxu0
        %v814 = vpop.f32.mrb[0].mxu0
        %v815 = vpop.f32.mrb[0].mxu0
        %816 = vdwg.mxu0
        %vm817 = vcmp.gt.f32.partialorder %v812, 0.0
        %v818 = vmul.f32 %v812, 0.2
        %v819 = vsel %vm817, %v812, %v818
        %820 = vst.msk [vmem:[%s633 + $0x4] sm:$0x1] %vm296, %v819
        %s821 = scalar_lea.vmem [#allocation6], 128
        %v822 = vld [vmem:[%s821] sm:$0xf]
        %v823 = vld [vmem:[%s821 + $0x4] sm:$0xf]
        %v824 = vld [vmem:[%s821 + $0x8] sm:$0xf]
        %v825 = vld [vmem:[%s821 + $0xc] sm:$0xf]
        %v826 = vld [vmem:[#allocation8] sm:$0x1]
        %v831 = vunpack.c.l.b16 %v822
        %v832 = vunpack.c.l.b16 %v823
        %v833 = vunpack.c.l.b16 %v824
        %v834 = vunpack.c.l.b16 %v825
        %v835 = vpack.c.b16 %v832, %v831
        %v836 = vpack.c.b16 %v834, %v833
        %839 = vmatprep.subr.bf16.mxu0 0
        %840 = vmatpush1.bf16.msra.mxu0 %v835
        %841 = vmatprep.subr.bf16.mxu0 0
        %842 = vmatpush1.bf16.msra.mxu0 %v836
        %843 = vmatprep.subr.bf16.mxu0 0
        %844 = vmatpush1.bf16.msra.mxu0 0
        %845 = vmatprep.subr.bf16.mxu0 0
        %846 = vmatpush1.bf16.msra.mxu0 0
        %847 = vmatprep.subr.bf16.mxu0 0
        %848 = vmatpush1.bf16.msra.mxu0 0
        %849 = vmatprep.subr.bf16.mxu0 0
        %850 = vmatpush1.bf16.msra.mxu0 0
        %851 = vmatprep.subr.bf16.mxu0 0
        %852 = vmatpush1.bf16.msra.mxu0 0
        %853 = vmatprep.subr.bf16.mxu0 0
        %854 = vmatpush1.bf16.msra.mxu0 0
        %855 = vmatprep.subr.bf16.mxu0 0
        %856 = vmatpush1.bf16.msra.mxu0 0
        %857 = vmatprep.subr.bf16.mxu0 0
        %858 = vmatpush1.bf16.msra.mxu0 0
        %859 = vmatprep.subr.bf16.mxu0 0
        %860 = vmatpush1.bf16.msra.mxu0 0
        %861 = vmatprep.subr.bf16.mxu0 0
        %862 = vmatpush1.bf16.msra.mxu0 0
        %863 = vmatprep.subr.bf16.mxu0 0
        %864 = vmatpush1.bf16.msra.mxu0 0
        %865 = vmatprep.subr.bf16.mxu0 0
        %866 = vmatpush1.bf16.msra.mxu0 0
        %867 = vmatprep.subr.bf16.mxu0 0
        %868 = vmatpush1.bf16.msra.mxu0 0
        %869 = vmatprep.subr.bf16.mxu0 0
        %870 = vmatpush1.bf16.msra.mxu0 0
        %871 = vmatprep.mubr.bf16.mxu0 0
        %872 = vmatmul.mubr.bf16.gmra.mrb[0].mxu0 %v339
        %v873 = vpop.f32.mrb[0].mxu0
        %v874 = vadd.f32 %v826, %v873
        %v875 = vpop.f32.mrb[0].mxu0
        %v876 = vpop.f32.mrb[0].mxu0
        %v877 = vpop.f32.mrb[0].mxu0
        %878 = vdwg.mxu0
        %vm879 = vcmp.gt.f32.partialorder %v874, 0.0
        %v880 = vmul.f32 %v874, 0.2
        %v881 = vsel %vm879, %v874, %v880
        %s882 = scalar_lea.vmem [#allocation2], 24
        %883 = vst.msk [vmem:[%s882 + $0x1] sm:$0x1] %vm296, %v881
        %s884 = scalar_lea.vmem [#allocation6], 144
        %v885 = vld [vmem:[%s884] sm:$0xf]
        %v886 = vld [vmem:[%s884 + $0x4] sm:$0xf]
        %v887 = vld [vmem:[%s884 + $0x8] sm:$0xf]
        %v888 = vld [vmem:[%s884 + $0xc] sm:$0xf]
        %v889 = vld [vmem:[#allocation8] sm:$0x1]
        %v894 = vunpack.c.l.b16 %v885
        %v895 = vunpack.c.l.b16 %v886
        %v896 = vunpack.c.l.b16 %v887
        %v897 = vunpack.c.l.b16 %v888
        %v898 = vpack.c.b16 %v895, %v894
        %v899 = vpack.c.b16 %v897, %v896
        %902 = vmatprep.subr.bf16.mxu0 0
        %903 = vmatpush1.bf16.msra.mxu0 %v898
        %904 = vmatprep.subr.bf16.mxu0 0
        %905 = vmatpush1.bf16.msra.mxu0 %v899
        %906 = vmatprep.subr.bf16.mxu0 0
        %907 = vmatpush1.bf16.msra.mxu0 0
        %908 = vmatprep.subr.bf16.mxu0 0
        %909 = vmatpush1.bf16.msra.mxu0 0
        %910 = vmatprep.subr.bf16.mxu0 0
        %911 = vmatpush1.bf16.msra.mxu0 0
        %912 = vmatprep.subr.bf16.mxu0 0
        %913 = vmatpush1.bf16.msra.mxu0 0
        %914 = vmatprep.subr.bf16.mxu0 0
        %915 = vmatpush1.bf16.msra.mxu0 0
        %916 = vmatprep.subr.bf16.mxu0 0
        %917 = vmatpush1.bf16.msra.mxu0 0
        %918 = vmatprep.subr.bf16.mxu0 0
        %919 = vmatpush1.bf16.msra.mxu0 0
        %920 = vmatprep.subr.bf16.mxu0 0
        %921 = vmatpush1.bf16.msra.mxu0 0
        %922 = vmatprep.subr.bf16.mxu0 0
        %923 = vmatpush1.bf16.msra.mxu0 0
        %924 = vmatprep.subr.bf16.mxu0 0
        %925 = vmatpush1.bf16.msra.mxu0 0
        %926 = vmatprep.subr.bf16.mxu0 0
        %927 = vmatpush1.bf16.msra.mxu0 0
        %928 = vmatprep.subr.bf16.mxu0 0
        %929 = vmatpush1.bf16.msra.mxu0 0
        %930 = vmatprep.subr.bf16.mxu0 0
        %931 = vmatpush1.bf16.msra.mxu0 0
        %932 = vmatprep.subr.bf16.mxu0 0
        %933 = vmatpush1.bf16.msra.mxu0 0
        %934 = vmatprep.mubr.bf16.mxu0 0
        %935 = vmatmul.mubr.bf16.gmra.mrb[0].mxu0 %v339
        %v936 = vpop.f32.mrb[0].mxu0
        %v937 = vadd.f32 %v889, %v936
        %v938 = vpop.f32.mrb[0].mxu0
        %v939 = vpop.f32.mrb[0].mxu0
        %v940 = vpop.f32.mrb[0].mxu0
        %941 = vdwg.mxu0
        %vm942 = vcmp.gt.f32.partialorder %v937, 0.0
        %v943 = vmul.f32 %v937, 0.2
        %v944 = vsel %vm942, %v937, %v943
        %945 = vst.msk [vmem:[%s882 + $0x2] sm:$0x1] %vm296, %v944
        %s946 = scalar_lea.vmem [#allocation6], 160
        %v947 = vld [vmem:[%s946] sm:$0xf]
        %v948 = vld [vmem:[%s946 + $0x4] sm:$0xf]
        %v949 = vld [vmem:[%s946 + $0x8] sm:$0xf]
        %v950 = vld [vmem:[%s946 + $0xc] sm:$0xf]
        %v951 = vld [vmem:[#allocation8] sm:$0x1]
        %v956 = vunpack.c.l.b16 %v947
        %v957 = vunpack.c.l.b16 %v948
        %v958 = vunpack.c.l.b16 %v949
        %v959 = vunpack.c.l.b16 %v950
        %v960 = vpack.c.b16 %v957, %v956
        %v961 = vpack.c.b16 %v959, %v958
        %964 = vmatprep.subr.bf16.mxu0 0
        %965 = vmatpush1.bf16.msra.mxu0 %v960
        %966 = vmatprep.subr.bf16.mxu0 0
        %967 = vmatpush1.bf16.msra.mxu0 %v961
        %968 = vmatprep.subr.bf16.mxu0 0
        %969 = vmatpush1.bf16.msra.mxu0 0
        %970 = vmatprep.subr.bf16.mxu0 0
        %971 = vmatpush1.bf16.msra.mxu0 0
        %972 = vmatprep.subr.bf16.mxu0 0
        %973 = vmatpush1.bf16.msra.mxu0 0
        %974 = vmatprep.subr.bf16.mxu0 0
        %975 = vmatpush1.bf16.msra.mxu0 0
        %976 = vmatprep.subr.bf16.mxu0 0
        %977 = vmatpush1.bf16.msra.mxu0 0
        %978 = vmatprep.subr.bf16.mxu0 0
        %979 = vmatpush1.bf16.msra.mxu0 0
        %980 = vmatprep.subr.bf16.mxu0 0
        %981 = vmatpush1.bf16.msra.mxu0 0
        %982 = vmatprep.subr.bf16.mxu0 0
        %983 = vmatpush1.bf16.msra.mxu0 0
        %984 = vmatprep.subr.bf16.mxu0 0
        %985 = vmatpush1.bf16.msra.mxu0 0
        %986 = vmatprep.subr.bf16.mxu0 0
        %987 = vmatpush1.bf16.msra.mxu0 0
        %988 = vmatprep.subr.bf16.mxu0 0
        %989 = vmatpush1.bf16.msra.mxu0 0
        %990 = vmatprep.subr.bf16.mxu0 0
        %991 = vmatpush1.bf16.msra.mxu0 0
        %992 = vmatprep.subr.bf16.mxu0 0
        %993 = vmatpush1.bf16.msra.mxu0 0
        %994 = vmatprep.subr.bf16.mxu0 0
        %995 = vmatpush1.bf16.msra.mxu0 0
        %996 = vmatprep.mubr.bf16.mxu0 0
        %997 = vmatmul.mubr.bf16.gmra.mrb[0].mxu0 %v339
        %v998 = vpop.f32.mrb[0].mxu0
        %v999 = vadd.f32 %v951, %v998
        %v1000 = vpop.f32.mrb[0].mxu0
        %v1001 = vpop.f32.mrb[0].mxu0
        %v1002 = vpop.f32.mrb[0].mxu0
        %1003 = vdwg.mxu0
        %vm1004 = vcmp.gt.f32.partialorder %v999, 0.0
        %v1005 = vmul.f32 %v999, 0.2
        %v1006 = vsel %vm1004, %v999, %v1005
        %1007 = vst.msk [vmem:[%s882 + $0x3] sm:$0x1] %vm296, %v1006
        %s1008 = scalar_lea.vmem [#allocation6], 176
        %v1009 = vld [vmem:[%s1008] sm:$0xf]
        %v1010 = vld [vmem:[%s1008 + $0x4] sm:$0xf]
        %v1011 = vld [vmem:[%s1008 + $0x8] sm:$0xf]
        %v1012 = vld [vmem:[%s1008 + $0xc] sm:$0xf]
        %v1013 = vld [vmem:[#allocation8] sm:$0x1]
        %v1018 = vunpack.c.l.b16 %v1009
        %v1019 = vunpack.c.l.b16 %v1010
        %v1020 = vunpack.c.l.b16 %v1011
        %v1021 = vunpack.c.l.b16 %v1012
        %v1022 = vpack.c.b16 %v1019, %v1018
        %v1023 = vpack.c.b16 %v1021, %v1020
        %1026 = vmatprep.subr.bf16.mxu0 0
        %1027 = vmatpush1.bf16.msra.mxu0 %v1022
        %1028 = vmatprep.subr.bf16.mxu0 0
        %1029 = vmatpush1.bf16.msra.mxu0 %v1023
        %1030 = vmatprep.subr.bf16.mxu0 0
        %1031 = vmatpush1.bf16.msra.mxu0 0
        %1032 = vmatprep.subr.bf16.mxu0 0
        %1033 = vmatpush1.bf16.msra.mxu0 0
        %1034 = vmatprep.subr.bf16.mxu0 0
        %1035 = vmatpush1.bf16.msra.mxu0 0
        %1036 = vmatprep.subr.bf16.mxu0 0
        %1037 = vmatpush1.bf16.msra.mxu0 0
        %1038 = vmatprep.subr.bf16.mxu0 0
        %1039 = vmatpush1.bf16.msra.mxu0 0
        %1040 = vmatprep.subr.bf16.mxu0 0
        %1041 = vmatpush1.bf16.msra.mxu0 0
        %1042 = vmatprep.subr.bf16.mxu0 0
        %1043 = vmatpush1.bf16.msra.mxu0 0
        %1044 = vmatprep.subr.bf16.mxu0 0
        %1045 = vmatpush1.bf16.msra.mxu0 0
        %1046 = vmatprep.subr.bf16.mxu0 0
        %1047 = vmatpush1.bf16.msra.mxu0 0
        %1048 = vmatprep.subr.bf16.mxu0 0
        %1049 = vmatpush1.bf16.msra.mxu0 0
        %1050 = vmatprep.subr.bf16.mxu0 0
        %1051 = vmatpush1.bf16.msra.mxu0 0
        %1052 = vmatprep.subr.bf16.mxu0 0
        %1053 = vmatpush1.bf16.msra.mxu0 0
        %1054 = vmatprep.subr.bf16.mxu0 0
        %1055 = vmatpush1.bf16.msra.mxu0 0
        %1056 = vmatprep.subr.bf16.mxu0 0
        %1057 = vmatpush1.bf16.msra.mxu0 0
        %1058 = vmatprep.mubr.bf16.mxu0 0
        %1059 = vmatmul.mubr.bf16.gmra.mrb[0].mxu0 %v339
        %v1060 = vpop.f32.mrb[0].mxu0
        %v1061 = vadd.f32 %v1013, %v1060
        %v1062 = vpop.f32.mrb[0].mxu0
        %v1063 = vpop.f32.mrb[0].mxu0
        %v1064 = vpop.f32.mrb[0].mxu0
        %1065 = vdwg.mxu0
        %vm1066 = vcmp.gt.f32.partialorder %v1061, 0.0
        %v1067 = vmul.f32 %v1061, 0.2
        %v1068 = vsel %vm1066, %v1061, %v1067
        %1069 = vst.msk [vmem:[%s882 + $0x4] sm:$0x1] %vm296, %v1068
        %s1070 = scalar_lea.vmem [#allocation6], 192
        %v1071 = vld [vmem:[%s1070] sm:$0xf]
        %v1072 = vld [vmem:[%s1070 + $0x4] sm:$0xf]
        %v1073 = vld [vmem:[%s1070 + $0x8] sm:$0xf]
        %v1074 = vld [vmem:[%s1070 + $0xc] sm:$0xf]
        %v1075 = vld [vmem:[#allocation8] sm:$0x1]
        %v1080 = vunpack.c.l.b16 %v1071
        %v1081 = vunpack.c.l.b16 %v1072
        %v1082 = vunpack.c.l.b16 %v1073
        %v1083 = vunpack.c.l.b16 %v1074
        %v1084 = vpack.c.b16 %v1081, %v1080
        %v1085 = vpack.c.b16 %v1083, %v1082
        %1088 = vmatprep.subr.bf16.mxu0 0
        %1089 = vmatpush1.bf16.msra.mxu0 %v1084
        %1090 = vmatprep.subr.bf16.mxu0 0
        %1091 = vmatpush1.bf16.msra.mxu0 %v1085
        %1092 = vmatprep.subr.bf16.mxu0 0
        %1093 = vmatpush1.bf16.msra.mxu0 0
        %1094 = vmatprep.subr.bf16.mxu0 0
        %1095 = vmatpush1.bf16.msra.mxu0 0
        %1096 = vmatprep.subr.bf16.mxu0 0
        %1097 = vmatpush1.bf16.msra.mxu0 0
        %1098 = vmatprep.subr.bf16.mxu0 0
        %1099 = vmatpush1.bf16.msra.mxu0 0
        %1100 = vmatprep.subr.bf16.mxu0 0
        %1101 = vmatpush1.bf16.msra.mxu0 0
        %1102 = vmatprep.subr.bf16.mxu0 0
        %1103 = vmatpush1.bf16.msra.mxu0 0
        %1104 = vmatprep.subr.bf16.mxu0 0
        %1105 = vmatpush1.bf16.msra.mxu0 0
        %1106 = vmatprep.subr.bf16.mxu0 0
        %1107 = vmatpush1.bf16.msra.mxu0 0
        %1108 = vmatprep.subr.bf16.mxu0 0
        %1109 = vmatpush1.bf16.msra.mxu0 0
        %1110 = vmatprep.subr.bf16.mxu0 0
        %1111 = vmatpush1.bf16.msra.mxu0 0
        %1112 = vmatprep.subr.bf16.mxu0 0
        %1113 = vmatpush1.bf16.msra.mxu0 0
        %1114 = vmatprep.subr.bf16.mxu0 0
        %1115 = vmatpush1.bf16.msra.mxu0 0
        %1116 = vmatprep.subr.bf16.mxu0 0
        %1117 = vmatpush1.bf16.msra.mxu0 0
        %1118 = vmatprep.subr.bf16.mxu0 0
        %1119 = vmatpush1.bf16.msra.mxu0 0
        %1120 = vmatprep.mubr.bf16.mxu0 0
        %1121 = vmatmul.mubr.bf16.gmra.mrb[0].mxu0 %v339
        %v1122 = vpop.f32.mrb[0].mxu0
        %v1123 = vadd.f32 %v1075, %v1122
        %v1124 = vpop.f32.mrb[0].mxu0
        %v1125 = vpop.f32.mrb[0].mxu0
        %v1126 = vpop.f32.mrb[0].mxu0
        %1127 = vdwg.mxu0
        %vm1128 = vcmp.gt.f32.partialorder %v1123, 0.0
        %v1129 = vmul.f32 %v1123, 0.2
        %v1130 = vsel %vm1128, %v1123, %v1129
        %s1131 = scalar_lea.vmem [#allocation2], 32
        %1132 = vst.msk [vmem:[%s1131 + $0x1] sm:$0x1] %vm296, %v1130
        %s1133 = scalar_lea.vmem [#allocation6], 208
        %v1134 = vld [vmem:[%s1133] sm:$0xf]
        %v1135 = vld [vmem:[%s1133 + $0x4] sm:$0xf]
        %v1136 = vld [vmem:[%s1133 + $0x8] sm:$0xf]
        %v1137 = vld [vmem:[%s1133 + $0xc] sm:$0xf]
        %v1138 = vld [vmem:[#allocation8] sm:$0x1]
        %v1143 = vunpack.c.l.b16 %v1134
        %v1144 = vunpack.c.l.b16 %v1135
        %v1145 = vunpack.c.l.b16 %v1136
        %v1146 = vunpack.c.l.b16 %v1137
        %v1147 = vpack.c.b16 %v1144, %v1143
        %v1148 = vpack.c.b16 %v1146, %v1145
        %1151 = vmatprep.subr.bf16.mxu0 0
        %1152 = vmatpush1.bf16.msra.mxu0 %v1147
        %1153 = vmatprep.subr.bf16.mxu0 0
        %1154 = vmatpush1.bf16.msra.mxu0 %v1148
        %1155 = vmatprep.subr.bf16.mxu0 0
        %1156 = vmatpush1.bf16.msra.mxu0 0
        %1157 = vmatprep.subr.bf16.mxu0 0
        %1158 = vmatpush1.bf16.msra.mxu0 0
        %1159 = vmatprep.subr.bf16.mxu0 0
        %1160 = vmatpush1.bf16.msra.mxu0 0
        %1161 = vmatprep.subr.bf16.mxu0 0
        %1162 = vmatpush1.bf16.msra.mxu0 0
        %1163 = vmatprep.subr.bf16.mxu0 0
        %1164 = vmatpush1.bf16.msra.mxu0 0
        %1165 = vmatprep.subr.bf16.mxu0 0
        %1166 = vmatpush1.bf16.msra.mxu0 0
        %1167 = vmatprep.subr.bf16.mxu0 0
        %1168 = vmatpush1.bf16.msra.mxu0 0
        %1169 = vmatprep.subr.bf16.mxu0 0
        %1170 = vmatpush1.bf16.msra.mxu0 0
        %1171 = vmatprep.subr.bf16.mxu0 0
        %1172 = vmatpush1.bf16.msra.mxu0 0
        %1173 = vmatprep.subr.bf16.mxu0 0
        %1174 = vmatpush1.bf16.msra.mxu0 0
        %1175 = vmatprep.subr.bf16.mxu0 0
        %1176 = vmatpush1.bf16.msra.mxu0 0
        %1177 = vmatprep.subr.bf16.mxu0 0
        %1178 = vmatpush1.bf16.msra.mxu0 0
        %1179 = vmatprep.subr.bf16.mxu0 0
        %1180 = vmatpush1.bf16.msra.mxu0 0
        %1181 = vmatprep.subr.bf16.mxu0 0
        %1182 = vmatpush1.bf16.msra.mxu0 0
        %1183 = vmatprep.mubr.bf16.mxu0 0
        %1184 = vmatmul.mubr.bf16.gmra.mrb[0].mxu0 %v339
        %v1185 = vpop.f32.mrb[0].mxu0
        %v1186 = vadd.f32 %v1138, %v1185
        %v1187 = vpop.f32.mrb[0].mxu0
        %v1188 = vpop.f32.mrb[0].mxu0
        %v1189 = vpop.f32.mrb[0].mxu0
        %1190 = vdwg.mxu0
        %vm1191 = vcmp.gt.f32.partialorder %v1186, 0.0
        %v1192 = vmul.f32 %v1186, 0.2
        %v1193 = vsel %vm1191, %v1186, %v1192
        %1194 = vst.msk [vmem:[%s1131 + $0x2] sm:$0x1] %vm296, %v1193
        %s1195 = scalar_lea.vmem [#allocation6], 224
        %v1196 = vld [vmem:[%s1195] sm:$0xf]
        %v1197 = vld [vmem:[%s1195 + $0x4] sm:$0xf]
        %v1198 = vld [vmem:[%s1195 + $0x8] sm:$0xf]
        %v1199 = vld [vmem:[%s1195 + $0xc] sm:$0xf]
        %v1200 = vld [vmem:[#allocation8] sm:$0x1]
        %v1205 = vunpack.c.l.b16 %v1196
        %v1206 = vunpack.c.l.b16 %v1197
        %v1207 = vunpack.c.l.b16 %v1198
        %v1208 = vunpack.c.l.b16 %v1199
        %v1209 = vpack.c.b16 %v1206, %v1205
        %v1210 = vpack.c.b16 %v1208, %v1207
        %1213 = vmatprep.subr.bf16.mxu0 0
        %1214 = vmatpush1.bf16.msra.mxu0 %v1209
        %1215 = vmatprep.subr.bf16.mxu0 0
        %1216 = vmatpush1.bf16.msra.mxu0 %v1210
        %1217 = vmatprep.subr.bf16.mxu0 0
        %1218 = vmatpush1.bf16.msra.mxu0 0
        %1219 = vmatprep.subr.bf16.mxu0 0
        %1220 = vmatpush1.bf16.msra.mxu0 0
        %1221 = vmatprep.subr.bf16.mxu0 0
        %1222 = vmatpush1.bf16.msra.mxu0 0
        %1223 = vmatprep.subr.bf16.mxu0 0
        %1224 = vmatpush1.bf16.msra.mxu0 0
        %1225 = vmatprep.subr.bf16.mxu0 0
        %1226 = vmatpush1.bf16.msra.mxu0 0
        %1227 = vmatprep.subr.bf16.mxu0 0
        %1228 = vmatpush1.bf16.msra.mxu0 0
        %1229 = vmatprep.subr.bf16.mxu0 0
        %1230 = vmatpush1.bf16.msra.mxu0 0
        %1231 = vmatprep.subr.bf16.mxu0 0
        %1232 = vmatpush1.bf16.msra.mxu0 0
        %1233 = vmatprep.subr.bf16.mxu0 0
        %1234 = vmatpush1.bf16.msra.mxu0 0
        %1235 = vmatprep.subr.bf16.mxu0 0
        %1236 = vmatpush1.bf16.msra.mxu0 0
        %1237 = vmatprep.subr.bf16.mxu0 0
        %1238 = vmatpush1.bf16.msra.mxu0 0
        %1239 = vmatprep.subr.bf16.mxu0 0
        %1240 = vmatpush1.bf16.msra.mxu0 0
        %1241 = vmatprep.subr.bf16.mxu0 0
        %1242 = vmatpush1.bf16.msra.mxu0 0
        %1243 = vmatprep.subr.bf16.mxu0 0
        %1244 = vmatpush1.bf16.msra.mxu0 0
        %1245 = vmatprep.mubr.bf16.mxu0 0
        %1246 = vmatmul.mubr.bf16.gmra.mrb[0].mxu0 %v339
        %v1247 = vpop.f32.mrb[0].mxu0
        %v1248 = vadd.f32 %v1200, %v1247
        %v1249 = vpop.f32.mrb[0].mxu0
        %v1250 = vpop.f32.mrb[0].mxu0
        %v1251 = vpop.f32.mrb[0].mxu0
        %1252 = vdwg.mxu0
        %vm1253 = vcmp.gt.f32.partialorder %v1248, 0.0
        %v1254 = vmul.f32 %v1248, 0.2
        %v1255 = vsel %vm1253, %v1248, %v1254
        %1256 = vst.msk [vmem:[%s1131 + $0x3] sm:$0x1] %vm296, %v1255
        %s1257 = scalar_lea.vmem [#allocation6], 240
        %v1258 = vld [vmem:[%s1257] sm:$0xf]
        %v1259 = vld [vmem:[%s1257 + $0x4] sm:$0xf]
        %v1260 = vld [vmem:[%s1257 + $0x8] sm:$0xf]
        %v1261 = vld [vmem:[%s1257 + $0xc] sm:$0xf]
        %v1262 = vld [vmem:[#allocation8] sm:$0x1]
        %v1267 = vunpack.c.l.b16 %v1258
        %v1268 = vunpack.c.l.b16 %v1259
        %v1269 = vunpack.c.l.b16 %v1260
        %v1270 = vunpack.c.l.b16 %v1261
        %v1271 = vpack.c.b16 %v1268, %v1267
        %v1272 = vpack.c.b16 %v1270, %v1269
        %1275 = vmatprep.subr.bf16.mxu0 0
        %1276 = vmatpush1.bf16.msra.mxu0 %v1271
        %1277 = vmatprep.subr.bf16.mxu0 0
        %1278 = vmatpush1.bf16.msra.mxu0 %v1272
        %1279 = vmatprep.subr.bf16.mxu0 0
        %1280 = vmatpush1.bf16.msra.mxu0 0
        %1281 = vmatprep.subr.bf16.mxu0 0
        %1282 = vmatpush1.bf16.msra.mxu0 0
        %1283 = vmatprep.subr.bf16.mxu0 0
        %1284 = vmatpush1.bf16.msra.mxu0 0
        %1285 = vmatprep.subr.bf16.mxu0 0
        %1286 = vmatpush1.bf16.msra.mxu0 0
        %1287 = vmatprep.subr.bf16.mxu0 0
        %1288 = vmatpush1.bf16.msra.mxu0 0
        %1289 = vmatprep.subr.bf16.mxu0 0
        %1290 = vmatpush1.bf16.msra.mxu0 0
        %1291 = vmatprep.subr.bf16.mxu0 0
        %1292 = vmatpush1.bf16.msra.mxu0 0
        %1293 = vmatprep.subr.bf16.mxu0 0
        %1294 = vmatpush1.bf16.msra.mxu0 0
        %1295 = vmatprep.subr.bf16.mxu0 0
        %1296 = vmatpush1.bf16.msra.mxu0 0
        %1297 = vmatprep.subr.bf16.mxu0 0
        %1298 = vmatpush1.bf16.msra.mxu0 0
        %1299 = vmatprep.subr.bf16.mxu0 0
        %1300 = vmatpush1.bf16.msra.mxu0 0
        %1301 = vmatprep.subr.bf16.mxu0 0
        %1302 = vmatpush1.bf16.msra.mxu0 0
        %1303 = vmatprep.subr.bf16.mxu0 0
        %1304 = vmatpush1.bf16.msra.mxu0 0
        %1305 = vmatprep.subr.bf16.mxu0 0
        %1306 = vmatpush1.bf16.msra.mxu0 0
        %1307 = vmatprep.mubr.bf16.mxu0 0
        %1308 = vmatmul.mubr.bf16.gmra.mrb[0].mxu0 %v339
        %v1309 = vpop.f32.mrb[0].mxu0
        %v1310 = vadd.f32 %v1262, %v1309
        %v1311 = vpop.f32.mrb[0].mxu0
        %v1312 = vpop.f32.mrb[0].mxu0
        %v1313 = vpop.f32.mrb[0].mxu0
        %1314 = vdwg.mxu0
        %vm1315 = vcmp.gt.f32.partialorder %v1310, 0.0
        %v1316 = vmul.f32 %v1310, 0.2
        %v1317 = vsel %vm1315, %v1310, %v1316
        %1318 = vst.msk [vmem:[%s1131 + $0x4] sm:$0x1] %vm296, %v1317
        %v1319 = vld [vmem:[#allocation2] sm:$0xf]
        %v1320 = vld [vmem:[#allocation2 + $0x8] sm:$0xf]
        %v1321 = vld [vmem:[#allocation2 + $0x10] sm:$0xf]
        %v1322 = vld [vmem:[#allocation2 + $0x18] sm:$0xf]
        %v1327 = vcombine.low %v1319, %v1320
        %v1328 = vcombine.low %v1321, %v1322
        %v1331 = vpack.c.bf16 %v1328, %v1327
        %v1332 = vld [vmem:[#allocation9] sm:$0xf]
        %v1333 = vld [vmem:[#allocation9 + $0x4] sm:$0xf]
        %v1334 = vld [vmem:[#allocation9 + $0x8] sm:$0xf]
        %v1335 = vld [vmem:[#allocation9 + $0xc] sm:$0xf]
        %v1336 = vld [vmem:[#allocation2 + $0x1] sm:$0xf]
        %v1337 = vld [vmem:[#allocation2 + $0x9] sm:$0xf]
        %v1338 = vld [vmem:[#allocation2 + $0x11] sm:$0xf]
        %v1339 = vld [vmem:[#allocation2 + $0x19] sm:$0xf]
        %v1344 = vcombine.low %v1336, %v1337
        %v1345 = vcombine.low %v1338, %v1339
        %v1348 = vpack.c.bf16 %v1345, %v1344
        %s1349 = scalar_lea.vmem [#allocation9], 16
        %v1350 = vld [vmem:[%s1349] sm:$0xf]
        %v1351 = vld [vmem:[%s1349 + $0x4] sm:$0xf]
        %v1352 = vld [vmem:[%s1349 + $0x8] sm:$0xf]
        %v1353 = vld [vmem:[%s1349 + $0xc] sm:$0xf]
        %v1358 = vunpack.c.l.b16 %v1350
        %v1359 = vunpack.c.l.b16 %v1351
        %v1360 = vunpack.c.l.b16 %v1352
        %v1361 = vunpack.c.l.b16 %v1353
        %v1362 = vpack.c.b16 %v1359, %v1358
        %v1363 = vpack.c.b16 %v1361, %v1360
        %v1367 = vsel %vm337, %v1348, 0
        %1369 = vmatprep.subr.bf16.mxu0 0
        %1370 = vmatpush1.bf16.msra.mxu0 %v1362
        %1371 = vmatprep.subr.bf16.mxu0 0
        %1372 = vmatpush1.bf16.msra.mxu0 %v1363
        %1373 = vmatprep.subr.bf16.mxu0 0
        %1374 = vmatpush1.bf16.msra.mxu0 0
        %1375 = vmatprep.subr.bf16.mxu0 0
        %1376 = vmatpush1.bf16.msra.mxu0 0
        %1377 = vmatprep.subr.bf16.mxu0 0
        %1378 = vmatpush1.bf16.msra.mxu0 0
        %1379 = vmatprep.subr.bf16.mxu0 0
        %1380 = vmatpush1.bf16.msra.mxu0 0
        %1381 = vmatprep.subr.bf16.mxu0 0
        %1382 = vmatpush1.bf16.msra.mxu0 0
        %1383 = vmatprep.subr.bf16.mxu0 0
        %1384 = vmatpush1.bf16.msra.mxu0 0
        %1385 = vmatprep.subr.bf16.mxu0 0
        %1386 = vmatpush1.bf16.msra.mxu0 0
        %1387 = vmatprep.subr.bf16.mxu0 0
        %1388 = vmatpush1.bf16.msra.mxu0 0
        %1389 = vmatprep.subr.bf16.mxu0 0
        %1390 = vmatpush1.bf16.msra.mxu0 0
        %1391 = vmatprep.subr.bf16.mxu0 0
        %1392 = vmatpush1.bf16.msra.mxu0 0
        %1393 = vmatprep.subr.bf16.mxu0 0
        %1394 = vmatpush1.bf16.msra.mxu0 0
        %1395 = vmatprep.subr.bf16.mxu0 0
        %1396 = vmatpush1.bf16.msra.mxu0 0
        %1397 = vmatprep.subr.bf16.mxu0 0
        %1398 = vmatpush1.bf16.msra.mxu0 0
        %1399 = vmatprep.subr.bf16.mxu0 0
        %1400 = vmatpush1.bf16.msra.mxu0 0
        %1401 = vmatprep.mubr.bf16.mxu0 0
        %1402 = vmatmul.mubr.bf16.gmra.mrb[0].mxu0 %v1367
        %v1403 = vpop.f32.mrb[0].mxu0
        %v1404 = vadd.f32 0.0, %v1403
        %v1405 = vpop.f32.mrb[0].mxu0
        %v1406 = vpop.f32.mrb[0].mxu0
        %v1407 = vadd.f32 0.0, %v1406
        %v1408 = vpop.f32.mrb[0].mxu0
        %1409 = vdwg.mxu0
        %v1414 = vunpack.c.l.b16 %v1332
        %v1415 = vunpack.c.l.b16 %v1333
        %v1416 = vunpack.c.l.b16 %v1334
        %v1417 = vunpack.c.l.b16 %v1335
        %v1418 = vpack.c.b16 %v1415, %v1414
        %v1419 = vpack.c.b16 %v1417, %v1416
        %v1423 = vsel %vm337, %v1331, 0
        %1425 = vmatprep.subr.bf16.mxu0 0
        %1426 = vmatpush1.bf16.msra.mxu0 %v1418
        %1427 = vmatprep.subr.bf16.mxu0 0
        %1428 = vmatpush1.bf16.msra.mxu0 %v1419
        %1429 = vmatprep.subr.bf16.mxu0 0
        %1430 = vmatpush1.bf16.msra.mxu0 0
        %1431 = vmatprep.subr.bf16.mxu0 0
        %1432 = vmatpush1.bf16.msra.mxu0 0
        %1433 = vmatprep.subr.bf16.mxu0 0
        %1434 = vmatpush1.bf16.msra.mxu0 0
        %1435 = vmatprep.subr.bf16.mxu0 0
        %1436 = vmatpush1.bf16.msra.mxu0 0
        %1437 = vmatprep.subr.bf16.mxu0 0
        %1438 = vmatpush1.bf16.msra.mxu0 0
        %1439 = vmatprep.subr.bf16.mxu0 0
        %1440 = vmatpush1.bf16.msra.mxu0 0
        %1441 = vmatprep.subr.bf16.mxu0 0
        %1442 = vmatpush1.bf16.msra.mxu0 0
        %1443 = vmatprep.subr.bf16.mxu0 0
        %1444 = vmatpush1.bf16.msra.mxu0 0
        %1445 = vmatprep.subr.bf16.mxu0 0
        %1446 = vmatpush1.bf16.msra.mxu0 0
        %1447 = vmatprep.subr.bf16.mxu0 0
        %1448 = vmatpush1.bf16.msra.mxu0 0
        %1449 = vmatprep.subr.bf16.mxu0 0
        %1450 = vmatpush1.bf16.msra.mxu0 0
        %1451 = vmatprep.subr.bf16.mxu0 0
        %1452 = vmatpush1.bf16.msra.mxu0 0
        %1453 = vmatprep.subr.bf16.mxu0 0
        %1454 = vmatpush1.bf16.msra.mxu0 0
        %1455 = vmatprep.subr.bf16.mxu0 0
        %1456 = vmatpush1.bf16.msra.mxu0 0
        %1457 = vmatprep.mubr.bf16.mxu0 0
        %1458 = vmatmul.mubr.bf16.gmra.mrb[0].mxu0 %v1423
        %v1459 = vpop.f32.mrb[0].mxu0
        %v1460 = vadd.f32 %v1404, %v1459
        %v1461 = vpop.f32.mrb[0].mxu0
        %v1462 = vpop.f32.mrb[0].mxu0
        %v1463 = vadd.f32 %v1407, %v1462
        %v1464 = vpop.f32.mrb[0].mxu0
        %1465 = vdwg.mxu0
        %v1466 = vld [vmem:[#allocation2 + $0x2] sm:$0xf]
        %v1467 = vld [vmem:[#allocation2 + $0xa] sm:$0xf]
        %v1468 = vld [vmem:[#allocation2 + $0x12] sm:$0xf]
        %v1469 = vld [vmem:[#allocation2 + $0x1a] sm:$0xf]
        %v1474 = vcombine.low %v1466, %v1467
        %v1475 = vcombine.low %v1468, %v1469
        %v1478 = vpack.c.bf16 %v1475, %v1474
        %s1479 = scalar_lea.vmem [#allocation9], 32
        %v1480 = vld [vmem:[%s1479] sm:$0xf]
        %v1481 = vld [vmem:[%s1479 + $0x4] sm:$0xf]
        %v1482 = vld [vmem:[%s1479 + $0x8] sm:$0xf]
        %v1483 = vld [vmem:[%s1479 + $0xc] sm:$0xf]
        %v1488 = vunpack.c.l.b16 %v1480
        %v1489 = vunpack.c.l.b16 %v1481
        %v1490 = vunpack.c.l.b16 %v1482
        %v1491 = vunpack.c.l.b16 %v1483
        %v1492 = vpack.c.b16 %v1489, %v1488
        %v1493 = vpack.c.b16 %v1491, %v1490
        %v1497 = vsel %vm337, %v1478, 0
        %1499 = vmatprep.subr.bf16.mxu0 0
        %1500 = vmatpush1.bf16.msra.mxu0 %v1492
        %1501 = vmatprep.subr.bf16.mxu0 0
        %1502 = vmatpush1.bf16.msra.mxu0 %v1493
        %1503 = vmatprep.subr.bf16.mxu0 0
        %1504 = vmatpush1.bf16.msra.mxu0 0
        %1505 = vmatprep.subr.bf16.mxu0 0
        %1506 = vmatpush1.bf16.msra.mxu0 0
        %1507 = vmatprep.subr.bf16.mxu0 0
        %1508 = vmatpush1.bf16.msra.mxu0 0
        %1509 = vmatprep.subr.bf16.mxu0 0
        %1510 = vmatpush1.bf16.msra.mxu0 0
        %1511 = vmatprep.subr.bf16.mxu0 0
        %1512 = vmatpush1.bf16.msra.mxu0 0
        %1513 = vmatprep.subr.bf16.mxu0 0
        %1514 = vmatpush1.bf16.msra.mxu0 0
        %1515 = vmatprep.subr.bf16.mxu0 0
        %1516 = vmatpush1.bf16.msra.mxu0 0
        %1517 = vmatprep.subr.bf16.mxu0 0
        %1518 = vmatpush1.bf16.msra.mxu0 0
        %1519 = vmatprep.subr.bf16.mxu0 0
        %1520 = vmatpush1.bf16.msra.mxu0 0
        %1521 = vmatprep.subr.bf16.mxu0 0
        %1522 = vmatpush1.bf16.msra.mxu0 0
        %1523 = vmatprep.subr.bf16.mxu0 0
        %1524 = vmatpush1.bf16.msra.mxu0 0
        %1525 = vmatprep.subr.bf16.mxu0 0
        %1526 = vmatpush1.bf16.msra.mxu0 0
        %1527 = vmatprep.subr.bf16.mxu0 0
        %1528 = vmatpush1.bf16.msra.mxu0 0
        %1529 = vmatprep.subr.bf16.mxu0 0
        %1530 = vmatpush1.bf16.msra.mxu0 0
        %1531 = vmatprep.mubr.bf16.mxu0 0
        %1532 = vmatmul.mubr.bf16.gmra.mrb[0].mxu0 %v1497
        %v1533 = vpop.f32.mrb[0].mxu0
        %v1534 = vadd.f32 0.0, %v1533
        %v1535 = vpop.f32.mrb[0].mxu0
        %v1536 = vpop.f32.mrb[0].mxu0
        %v1537 = vadd.f32 0.0, %v1536
        %v1538 = vpop.f32.mrb[0].mxu0
        %1539 = vdwg.mxu0
        %v1540 = vadd.f32 %v1460, %v1534
        %v1541 = vadd.f32 %v1463, %v1537
        %v1542 = vld [vmem:[%s384] sm:$0xf]
        %v1543 = vld [vmem:[%s384 + $0x8] sm:$0xf]
        %v1544 = vld [vmem:[%s384 + $0x10] sm:$0xf]
        %v1545 = vld [vmem:[%s384 + $0x18] sm:$0xf]
        %v1550 = vcombine.low %v1542, %v1543
        %v1551 = vcombine.low %v1544, %v1545
        %v1554 = vpack.c.bf16 %v1551, %v1550
        %s1555 = scalar_lea.vmem [#allocation9], 48
        %v1556 = vld [vmem:[%s1555] sm:$0xf]
        %v1557 = vld [vmem:[%s1555 + $0x4] sm:$0xf]
        %v1558 = vld [vmem:[%s1555 + $0x8] sm:$0xf]
        %v1559 = vld [vmem:[%s1555 + $0xc] sm:$0xf]
        %v1564 = vunpack.c.l.b16 %v1556
        %v1565 = vunpack.c.l.b16 %v1557
        %v1566 = vunpack.c.l.b16 %v1558
        %v1567 = vunpack.c.l.b16 %v1559
        %v1568 = vpack.c.b16 %v1565, %v1564
        %v1569 = vpack.c.b16 %v1567, %v1566
        %v1573 = vsel %vm337, %v1554, 0
        %1575 = vmatprep.subr.bf16.mxu0 0
        %1576 = vmatpush1.bf16.msra.mxu0 %v1568
        %1577 = vmatprep.subr.bf16.mxu0 0
        %1578 = vmatpush1.bf16.msra.mxu0 %v1569
        %1579 = vmatprep.subr.bf16.mxu0 0
        %1580 = vmatpush1.bf16.msra.mxu0 0
        %1581 = vmatprep.subr.bf16.mxu0 0
        %1582 = vmatpush1.bf16.msra.mxu0 0
        %1583 = vmatprep.subr.bf16.mxu0 0
        %1584 = vmatpush1.bf16.msra.mxu0 0
        %1585 = vmatprep.subr.bf16.mxu0 0
        %1586 = vmatpush1.bf16.msra.mxu0 0
        %1587 = vmatprep.subr.bf16.mxu0 0
        %1588 = vmatpush1.bf16.msra.mxu0 0
        %1589 = vmatprep.subr.bf16.mxu0 0
        %1590 = vmatpush1.bf16.msra.mxu0 0
        %1591 = vmatprep.subr.bf16.mxu0 0
        %1592 = vmatpush1.bf16.msra.mxu0 0
        %1593 = vmatprep.subr.bf16.mxu0 0
        %1594 = vmatpush1.bf16.msra.mxu0 0
        %1595 = vmatprep.subr.bf16.mxu0 0
        %1596 = vmatpush1.bf16.msra.mxu0 0
        %1597 = vmatprep.subr.bf16.mxu0 0
        %1598 = vmatpush1.bf16.msra.mxu0 0
        %1599 = vmatprep.subr.bf16.mxu0 0
        %1600 = vmatpush1.bf16.msra.mxu0 0
        %1601 = vmatprep.subr.bf16.mxu0 0
        %1602 = vmatpush1.bf16.msra.mxu0 0
        %1603 = vmatprep.subr.bf16.mxu0 0
        %1604 = vmatpush1.bf16.msra.mxu0 0
        %1605 = vmatprep.subr.bf16.mxu0 0
        %1606 = vmatpush1.bf16.msra.mxu0 0
        %1607 = vmatprep.mubr.bf16.mxu0 0
        %1608 = vmatmul.mubr.bf16.gmra.mrb[0].mxu0 %v1573
        %v1609 = vpop.f32.mrb[0].mxu0
        %v1610 = vadd.f32 0.0, %v1609
        %v1611 = vpop.f32.mrb[0].mxu0
        %v1612 = vpop.f32.mrb[0].mxu0
        %v1613 = vadd.f32 0.0, %v1612
        %v1614 = vpop.f32.mrb[0].mxu0
        %1615 = vdwg.mxu0
        %v1616 = vadd.f32 %v1540, %v1610
        %v1617 = vadd.f32 %v1541, %v1613
        %v1618 = vld [vmem:[%s384 + $0x1] sm:$0xf]
        %v1619 = vld [vmem:[%s384 + $0x9] sm:$0xf]
        %v1620 = vld [vmem:[%s384 + $0x11] sm:$0xf]
        %v1621 = vld [vmem:[%s384 + $0x19] sm:$0xf]
        %v1626 = vcombine.low %v1618, %v1619
        %v1627 = vcombine.low %v1620, %v1621
        %v1630 = vpack.c.bf16 %v1627, %v1626
        %s1631 = scalar_lea.vmem [#allocation9], 64
        %v1632 = vld [vmem:[%s1631] sm:$0xf]
        %v1633 = vld [vmem:[%s1631 + $0x4] sm:$0xf]
        %v1634 = vld [vmem:[%s1631 + $0x8] sm:$0xf]
        %v1635 = vld [vmem:[%s1631 + $0xc] sm:$0xf]
        %v1640 = vunpack.c.l.b16 %v1632
        %v1641 = vunpack.c.l.b16 %v1633
        %v1642 = vunpack.c.l.b16 %v1634
        %v1643 = vunpack.c.l.b16 %v1635
        %v1644 = vpack.c.b16 %v1641, %v1640
        %v1645 = vpack.c.b16 %v1643, %v1642
        %v1649 = vsel %vm337, %v1630, 0
        %1651 = vmatprep.subr.bf16.mxu0 0
        %1652 = vmatpush1.bf16.msra.mxu0 %v1644
        %1653 = vmatprep.subr.bf16.mxu0 0
        %1654 = vmatpush1.bf16.msra.mxu0 %v1645
        %1655 = vmatprep.subr.bf16.mxu0 0
        %1656 = vmatpush1.bf16.msra.mxu0 0
        %1657 = vmatprep.subr.bf16.mxu0 0
        %1658 = vmatpush1.bf16.msra.mxu0 0
        %1659 = vmatprep.subr.bf16.mxu0 0
        %1660 = vmatpush1.bf16.msra.mxu0 0
        %1661 = vmatprep.subr.bf16.mxu0 0
        %1662 = vmatpush1.bf16.msra.mxu0 0
        %1663 = vmatprep.subr.bf16.mxu0 0
        %1664 = vmatpush1.bf16.msra.mxu0 0
        %1665 = vmatprep.subr.bf16.mxu0 0
        %1666 = vmatpush1.bf16.msra.mxu0 0
        %1667 = vmatprep.subr.bf16.mxu0 0
        %1668 = vmatpush1.bf16.msra.mxu0 0
        %1669 = vmatprep.subr.bf16.mxu0 0
        %1670 = vmatpush1.bf16.msra.mxu0 0
        %1671 = vmatprep.subr.bf16.mxu0 0
        %1672 = vmatpush1.bf16.msra.mxu0 0
        %1673 = vmatprep.subr.bf16.mxu0 0
        %1674 = vmatpush1.bf16.msra.mxu0 0
        %1675 = vmatprep.subr.bf16.mxu0 0
        %1676 = vmatpush1.bf16.msra.mxu0 0
        %1677 = vmatprep.subr.bf16.mxu0 0
        %1678 = vmatpush1.bf16.msra.mxu0 0
        %1679 = vmatprep.subr.bf16.mxu0 0
        %1680 = vmatpush1.bf16.msra.mxu0 0
        %1681 = vmatprep.subr.bf16.mxu0 0
        %1682 = vmatpush1.bf16.msra.mxu0 0
        %1683 = vmatprep.mubr.bf16.mxu0 0
        %1684 = vmatmul.mubr.bf16.gmra.mrb[0].mxu0 %v1649
        %v1685 = vpop.f32.mrb[0].mxu0
        %v1686 = vadd.f32 0.0, %v1685
        %v1687 = vpop.f32.mrb[0].mxu0
        %v1688 = vpop.f32.mrb[0].mxu0
        %v1689 = vadd.f32 0.0, %v1688
        %v1690 = vpop.f32.mrb[0].mxu0
        %1691 = vdwg.mxu0
        %v1692 = vadd.f32 %v1616, %v1686
        %v1693 = vadd.f32 %v1617, %v1689
        %v1694 = vld [vmem:[%s384 + $0x2] sm:$0xf]
        %v1695 = vld [vmem:[%s384 + $0xa] sm:$0xf]
        %v1696 = vld [vmem:[%s384 + $0x12] sm:$0xf]
        %v1697 = vld [vmem:[%s384 + $0x1a] sm:$0xf]
        %v1702 = vcombine.low %v1694, %v1695
        %v1703 = vcombine.low %v1696, %v1697
        %v1706 = vpack.c.bf16 %v1703, %v1702
        %s1707 = scalar_lea.vmem [#allocation9], 80
        %v1708 = vld [vmem:[%s1707] sm:$0xf]
        %v1709 = vld [vmem:[%s1707 + $0x4] sm:$0xf]
        %v1710 = vld [vmem:[%s1707 + $0x8] sm:$0xf]
        %v1711 = vld [vmem:[%s1707 + $0xc] sm:$0xf]
        %v1716 = vunpack.c.l.b16 %v1708
        %v1717 = vunpack.c.l.b16 %v1709
        %v1718 = vunpack.c.l.b16 %v1710
        %v1719 = vunpack.c.l.b16 %v1711
        %v1720 = vpack.c.b16 %v1717, %v1716
        %v1721 = vpack.c.b16 %v1719, %v1718
        %v1725 = vsel %vm337, %v1706, 0
        %1727 = vmatprep.subr.bf16.mxu0 0
        %1728 = vmatpush1.bf16.msra.mxu0 %v1720
        %1729 = vmatprep.subr.bf16.mxu0 0
        %1730 = vmatpush1.bf16.msra.mxu0 %v1721
        %1731 = vmatprep.subr.bf16.mxu0 0
        %1732 = vmatpush1.bf16.msra.mxu0 0
        %1733 = vmatprep.subr.bf16.mxu0 0
        %1734 = vmatpush1.bf16.msra.mxu0 0
        %1735 = vmatprep.subr.bf16.mxu0 0
        %1736 = vmatpush1.bf16.msra.mxu0 0
        %1737 = vmatprep.subr.bf16.mxu0 0
        %1738 = vmatpush1.bf16.msra.mxu0 0
        %1739 = vmatprep.subr.bf16.mxu0 0
        %1740 = vmatpush1.bf16.msra.mxu0 0
        %1741 = vmatprep.subr.bf16.mxu0 0
        %1742 = vmatpush1.bf16.msra.mxu0 0
        %1743 = vmatprep.subr.bf16.mxu0 0
        %1744 = vmatpush1.bf16.msra.mxu0 0
        %1745 = vmatprep.subr.bf16.mxu0 0
        %1746 = vmatpush1.bf16.msra.mxu0 0
        %1747 = vmatprep.subr.bf16.mxu0 0
        %1748 = vmatpush1.bf16.msra.mxu0 0
        %1749 = vmatprep.subr.bf16.mxu0 0
        %1750 = vmatpush1.bf16.msra.mxu0 0
        %1751 = vmatprep.subr.bf16.mxu0 0
        %1752 = vmatpush1.bf16.msra.mxu0 0
        %1753 = vmatprep.subr.bf16.mxu0 0
        %1754 = vmatpush1.bf16.msra.mxu0 0
        %1755 = vmatprep.subr.bf16.mxu0 0
        %1756 = vmatpush1.bf16.msra.mxu0 0
        %1757 = vmatprep.subr.bf16.mxu0 0
        %1758 = vmatpush1.bf16.msra.mxu0 0
        %1759 = vmatprep.mubr.bf16.mxu0 0
        %1760 = vmatmul.mubr.bf16.gmra.mrb[0].mxu0 %v1725
        %v1761 = vpop.f32.mrb[0].mxu0
        %v1762 = vadd.f32 0.0, %v1761
        %v1763 = vpop.f32.mrb[0].mxu0
        %v1764 = vpop.f32.mrb[0].mxu0
        %v1765 = vadd.f32 0.0, %v1764
        %v1766 = vpop.f32.mrb[0].mxu0
        %1767 = vdwg.mxu0
        %v1768 = vadd.f32 %v1692, %v1762
        %v1769 = vadd.f32 %v1693, %v1765
        %v1770 = vld [vmem:[%s633] sm:$0xf]
        %v1771 = vld [vmem:[%s633 + $0x8] sm:$0xf]
        %v1772 = vld [vmem:[%s633 + $0x10] sm:$0xf]
        %v1773 = vld [vmem:[%s633 + $0x18] sm:$0xf]
        %v1778 = vcombine.low %v1770, %v1771
        %v1779 = vcombine.low %v1772, %v1773
        %v1782 = vpack.c.bf16 %v1779, %v1778
        %s1783 = scalar_lea.vmem [#allocation9], 96
        %v1784 = vld [vmem:[%s1783] sm:$0xf]
        %v1785 = vld [vmem:[%s1783 + $0x4] sm:$0xf]
        %v1786 = vld [vmem:[%s1783 + $0x8] sm:$0xf]
        %v1787 = vld [vmem:[%s1783 + $0xc] sm:$0xf]
        %v1792 = vunpack.c.l.b16 %v1784
        %v1793 = vunpack.c.l.b16 %v1785
        %v1794 = vunpack.c.l.b16 %v1786
        %v1795 = vunpack.c.l.b16 %v1787
        %v1796 = vpack.c.b16 %v1793, %v1792
        %v1797 = vpack.c.b16 %v1795, %v1794
        %v1801 = vsel %vm337, %v1782, 0
        %1803 = vmatprep.subr.bf16.mxu0 0
        %1804 = vmatpush1.bf16.msra.mxu0 %v1796
        %1805 = vmatprep.subr.bf16.mxu0 0
        %1806 = vmatpush1.bf16.msra.mxu0 %v1797
        %1807 = vmatprep.subr.bf16.mxu0 0
        %1808 = vmatpush1.bf16.msra.mxu0 0
        %1809 = vmatprep.subr.bf16.mxu0 0
        %1810 = vmatpush1.bf16.msra.mxu0 0
        %1811 = vmatprep.subr.bf16.mxu0 0
        %1812 = vmatpush1.bf16.msra.mxu0 0
        %1813 = vmatprep.subr.bf16.mxu0 0
        %1814 = vmatpush1.bf16.msra.mxu0 0
        %1815 = vmatprep.subr.bf16.mxu0 0
        %1816 = vmatpush1.bf16.msra.mxu0 0
        %1817 = vmatprep.subr.bf16.mxu0 0
        %1818 = vmatpush1.bf16.msra.mxu0 0
        %1819 = vmatprep.subr.bf16.mxu0 0
        %1820 = vmatpush1.bf16.msra.mxu0 0
        %1821 = vmatprep.subr.bf16.mxu0 0
        %1822 = vmatpush1.bf16.msra.mxu0 0
        %1823 = vmatprep.subr.bf16.mxu0 0
        %1824 = vmatpush1.bf16.msra.mxu0 0
        %1825 = vmatprep.subr.bf16.mxu0 0
        %1826 = vmatpush1.bf16.msra.mxu0 0
        %1827 = vmatprep.subr.bf16.mxu0 0
        %1828 = vmatpush1.bf16.msra.mxu0 0
        %1829 = vmatprep.subr.bf16.mxu0 0
        %1830 = vmatpush1.bf16.msra.mxu0 0
        %1831 = vmatprep.subr.bf16.mxu0 0
        %1832 = vmatpush1.bf16.msra.mxu0 0
        %1833 = vmatprep.subr.bf16.mxu0 0
        %1834 = vmatpush1.bf16.msra.mxu0 0
        %1835 = vmatprep.mubr.bf16.mxu0 0
        %1836 = vmatmul.mubr.bf16.gmra.mrb[0].mxu0 %v1801
        %v1837 = vpop.f32.mrb[0].mxu0
        %v1838 = vadd.f32 0.0, %v1837
        %v1839 = vpop.f32.mrb[0].mxu0
        %v1840 = vpop.f32.mrb[0].mxu0
        %v1841 = vadd.f32 0.0, %v1840
        %v1842 = vpop.f32.mrb[0].mxu0
        %1843 = vdwg.mxu0
        %v1844 = vadd.f32 %v1768, %v1838
        %v1845 = vadd.f32 %v1769, %v1841
        %v1846 = vld [vmem:[%s633 + $0x1] sm:$0xf]
        %v1847 = vld [vmem:[%s633 + $0x9] sm:$0xf]
        %v1848 = vld [vmem:[%s633 + $0x11] sm:$0xf]
        %v1849 = vld [vmem:[%s633 + $0x19] sm:$0xf]
        %v1854 = vcombine.low %v1846, %v1847
        %v1855 = vcombine.low %v1848, %v1849
        %v1858 = vpack.c.bf16 %v1855, %v1854
        %s1859 = scalar_lea.vmem [#allocation9], 112
        %v1860 = vld [vmem:[%s1859] sm:$0xf]
        %v1861 = vld [vmem:[%s1859 + $0x4] sm:$0xf]
        %v1862 = vld [vmem:[%s1859 + $0x8] sm:$0xf]
        %v1863 = vld [vmem:[%s1859 + $0xc] sm:$0xf]
        %v1868 = vunpack.c.l.b16 %v1860
        %v1869 = vunpack.c.l.b16 %v1861
        %v1870 = vunpack.c.l.b16 %v1862
        %v1871 = vunpack.c.l.b16 %v1863
        %v1872 = vpack.c.b16 %v1869, %v1868
        %v1873 = vpack.c.b16 %v1871, %v1870
        %v1877 = vsel %vm337, %v1858, 0
        %1879 = vmatprep.subr.bf16.mxu0 0
        %1880 = vmatpush1.bf16.msra.mxu0 %v1872
        %1881 = vmatprep.subr.bf16.mxu0 0
        %1882 = vmatpush1.bf16.msra.mxu0 %v1873
        %1883 = vmatprep.subr.bf16.mxu0 0
        %1884 = vmatpush1.bf16.msra.mxu0 0
        %1885 = vmatprep.subr.bf16.mxu0 0
        %1886 = vmatpush1.bf16.msra.mxu0 0
        %1887 = vmatprep.subr.bf16.mxu0 0
        %1888 = vmatpush1.bf16.msra.mxu0 0
        %1889 = vmatprep.subr.bf16.mxu0 0
        %1890 = vmatpush1.bf16.msra.mxu0 0
        %1891 = vmatprep.subr.bf16.mxu0 0
        %1892 = vmatpush1.bf16.msra.mxu0 0
        %1893 = vmatprep.subr.bf16.mxu0 0
        %1894 = vmatpush1.bf16.msra.mxu0 0
        %1895 = vmatprep.subr.bf16.mxu0 0
        %1896 = vmatpush1.bf16.msra.mxu0 0
        %1897 = vmatprep.subr.bf16.mxu0 0
        %1898 = vmatpush1.bf16.msra.mxu0 0
        %1899 = vmatprep.subr.bf16.mxu0 0
        %1900 = vmatpush1.bf16.msra.mxu0 0
        %1901 = vmatprep.subr.bf16.mxu0 0
        %1902 = vmatpush1.bf16.msra.mxu0 0
        %1903 = vmatprep.subr.bf16.mxu0 0
        %1904 = vmatpush1.bf16.msra.mxu0 0
        %1905 = vmatprep.subr.bf16.mxu0 0
        %1906 = vmatpush1.bf16.msra.mxu0 0
        %1907 = vmatprep.subr.bf16.mxu0 0
        %1908 = vmatpush1.bf16.msra.mxu0 0
        %1909 = vmatprep.subr.bf16.mxu0 0
        %1910 = vmatpush1.bf16.msra.mxu0 0
        %1911 = vmatprep.mubr.bf16.mxu0 0
        %1912 = vmatmul.mubr.bf16.gmra.mrb[0].mxu0 %v1877
        %v1913 = vpop.f32.mrb[0].mxu0
        %v1914 = vadd.f32 0.0, %v1913
        %v1915 = vpop.f32.mrb[0].mxu0
        %v1916 = vpop.f32.mrb[0].mxu0
        %v1917 = vadd.f32 0.0, %v1916
        %v1918 = vpop.f32.mrb[0].mxu0
        %1919 = vdwg.mxu0
        %v1920 = vadd.f32 %v1844, %v1914
        %v1921 = vadd.f32 %v1845, %v1917
        %v1922 = vld [vmem:[%s633 + $0x2] sm:$0xf]
        %v1923 = vld [vmem:[%s633 + $0xa] sm:$0xf]
        %v1924 = vld [vmem:[%s633 + $0x12] sm:$0xf]
        %v1925 = vld [vmem:[%s633 + $0x1a] sm:$0xf]
        %v1930 = vcombine.low %v1922, %v1923
        %v1931 = vcombine.low %v1924, %v1925
        %v1934 = vpack.c.bf16 %v1931, %v1930
        %s1935 = scalar_lea.vmem [#allocation9], 128
        %v1936 = vld [vmem:[%s1935] sm:$0xf]
        %v1937 = vld [vmem:[%s1935 + $0x4] sm:$0xf]
        %v1938 = vld [vmem:[%s1935 + $0x8] sm:$0xf]
        %v1939 = vld [vmem:[%s1935 + $0xc] sm:$0xf]
        %v1944 = vunpack.c.l.b16 %v1936
        %v1945 = vunpack.c.l.b16 %v1937
        %v1946 = vunpack.c.l.b16 %v1938
        %v1947 = vunpack.c.l.b16 %v1939
        %v1948 = vpack.c.b16 %v1945, %v1944
        %v1949 = vpack.c.b16 %v1947, %v1946
        %v1953 = vsel %vm337, %v1934, 0
        %1955 = vmatprep.subr.bf16.mxu0 0
        %1956 = vmatpush1.bf16.msra.mxu0 %v1948
        %1957 = vmatprep.subr.bf16.mxu0 0
        %1958 = vmatpush1.bf16.msra.mxu0 %v1949
        %1959 = vmatprep.subr.bf16.mxu0 0
        %1960 = vmatpush1.bf16.msra.mxu0 0
        %1961 = vmatprep.subr.bf16.mxu0 0
        %1962 = vmatpush1.bf16.msra.mxu0 0
        %1963 = vmatprep.subr.bf16.mxu0 0
        %1964 = vmatpush1.bf16.msra.mxu0 0
        %1965 = vmatprep.subr.bf16.mxu0 0
        %1966 = vmatpush1.bf16.msra.mxu0 0
        %1967 = vmatprep.subr.bf16.mxu0 0
        %1968 = vmatpush1.bf16.msra.mxu0 0
        %1969 = vmatprep.subr.bf16.mxu0 0
        %1970 = vmatpush1.bf16.msra.mxu0 0
        %1971 = vmatprep.subr.bf16.mxu0 0
        %1972 = vmatpush1.bf16.msra.mxu0 0
        %1973 = vmatprep.subr.bf16.mxu0 0
        %1974 = vmatpush1.bf16.msra.mxu0 0
        %1975 = vmatprep.subr.bf16.mxu0 0
        %1976 = vmatpush1.bf16.msra.mxu0 0
        %1977 = vmatprep.subr.bf16.mxu0 0
        %1978 = vmatpush1.bf16.msra.mxu0 0
        %1979 = vmatprep.subr.bf16.mxu0 0
        %1980 = vmatpush1.bf16.msra.mxu0 0
        %1981 = vmatprep.subr.bf16.mxu0 0
        %1982 = vmatpush1.bf16.msra.mxu0 0
        %1983 = vmatprep.subr.bf16.mxu0 0
        %1984 = vmatpush1.bf16.msra.mxu0 0
        %1985 = vmatprep.subr.bf16.mxu0 0
        %1986 = vmatpush1.bf16.msra.mxu0 0
        %1987 = vmatprep.mubr.bf16.mxu0 0
        %1988 = vmatmul.mubr.bf16.gmra.mrb[0].mxu0 %v1953
        %v1989 = vpop.f32.mrb[0].mxu0
        %v1990 = vadd.f32 0.0, %v1989
        %v1991 = vpop.f32.mrb[0].mxu0
        %v1992 = vpop.f32.mrb[0].mxu0
        %v1993 = vadd.f32 0.0, %v1992
        %v1994 = vpop.f32.mrb[0].mxu0
        %1995 = vdwg.mxu0
        %v1996 = vadd.f32 %v1920, %v1990
        %v1997 = vadd.f32 %v1921, %v1993
        %v1998 = vld [vmem:[#allocation11] sm:$0x1]
        %v2000 = vlaneseq
        %v2001 = vshrl.u32 %v2000, 7
        %v2002 = vsub.s32 0, %v2001
        %v2003 = vrot.slane %v1998, %v2002
        %v2005 = vadd.f32 %v1996, %v2003
        %v2006 = vadd.f32 %v1997, %v2003
        %vm2007 = vcmp.gt.f32.partialorder %v2005, 0.0
        %vm2008 = vcmp.gt.f32.partialorder %v2006, 0.0
        %v2009 = vmul.f32 %v2005, 0.2
        %v2010 = vmul.f32 %v2006, 0.2
        %v2011 = vsel %vm2007, %v2005, %v2009
        %v2012 = vsel %vm2008, %v2006, %v2010
        %v2013 = vmul.f32 %v2011, %v2011
        %v2014 = vmul.f32 %v2012, %v2012
        %v2015 = vsel %vm337, %v2013, 0.0
        %2016 = vadd.xlane.f32.xlu0 %v2015
        %v2017 = vpop.xlane.xlu0 %2016
        %v2018 = vsel %vm337, %v2014, 0.0
        %2019 = vadd.xlane.f32.xlu0 %v2018
        %v2020 = vpop.xlane.xlu0 %2019
        %v2021 = vmul.f32 %v2017, %v314
        %v2022 = vmul.f32 %v2020, %v314
        %v2023 = vadd.f32 %v2021, 1e-08
        %v2024 = vadd.f32 %v2022, 1e-08
        %v2025 = vrsqrt.pop %v2023
        %v2026 = vrsqrt.pop %v2024
        %v2027 = vmul.f32 %v2011, %v2025
        %v2028 = vmul.f32 %v2012, %v2026
        %2029 = vxpose.xlu0.b32.start [1/16] %v2027, 128
        %2030 = vxpose.xlu0.b32.cont [2/16] %v2028, 128
        %2031 = vxpose.xlu0.b32.cont [3/16] 0.0, 128
        %2032 = vxpose.xlu0.b32.cont [4/16] 0.0, 128
        %2033 = vxpose.xlu0.b32.cont [5/16] 0.0, 128
        %2034 = vxpose.xlu0.b32.cont [6/16] 0.0, 128
        %2035 = vxpose.xlu0.b32.cont [7/16] 0.0, 128
        %2036 = vxpose.xlu0.b32.cont [8/16] 0.0, 128
        %2037 = vxpose.xlu0.b32.cont [9/16] 0.0, 128
        %2038 = vxpose.xlu0.b32.cont [10/16] 0.0, 128
        %2039 = vxpose.xlu0.b32.cont [11/16] 0.0, 128
        %2040 = vxpose.xlu0.b32.cont [12/16] 0.0, 128
        %2041 = vxpose.xlu0.b32.cont [13/16] 0.0, 128
        %2042 = vxpose.xlu0.b32.cont [14/16] 0.0, 128
        %2043 = vxpose.xlu0.b32.cont [15/16] 0.0, 128
        %2044 = vxpose.xlu0.b32.end [16/16] 0.0, 128
        %v2045 = vpop.trf.xlu0
        %v2046 = vpop.trf.xlu0
        %v2047 = vpop.trf.xlu0
        %v2048 = vpop.trf.xlu0
        %v2049 = vpop.trf.xlu0
        %v2050 = vpop.trf.xlu0
        %v2051 = vpop.trf.xlu0
        %v2052 = vpop.trf.xlu0
        %v2053 = vpop.trf.xlu0
        %v2054 = vpop.trf.xlu0
        %v2055 = vpop.trf.xlu0
        %v2056 = vpop.trf.xlu0
        %v2057 = vpop.trf.xlu0
        %v2058 = vpop.trf.xlu0
        %v2059 = vpop.trf.xlu0
        %v2060 = vpop.trf.xlu0
        %vm2061 = vcmask 130048
        %2062 = vst.msk [vmem:[%s290] sm:$0xff] %vm2061, %v2045
        %2063 = vst.msk [vmem:[%s290 + $0x8] sm:$0xff] %vm2061, %v2046
        %2064 = vst.msk [vmem:[%s290 + $0x10] sm:$0xff] %vm2061, %v2047
        %2065 = vst.msk [vmem:[%s290 + $0x18] sm:$0xff] %vm2061, %v2048
        %s2066 = sand.u32 %s142, 1
        %s2067 = scalar_lea.sflag [#allocation5], %s2066
        %s2068 = sand.u32 %s142, 1
        %s2069 = smul.addr %s2068, 32
        %s2070 = scalar_lea.vmem [#allocation12], %s2069
        // Predicated region
        $region61: #{tpu_custom_call.1} parent=39 // pred_check
          %p2071 = pneg %p152
        $region62: #{tpu_custom_call.1} parent=39 // pred_check_branch
          %2073 = sbr.rel (%p2071) target = $region64
        $region63: #{tpu_custom_call.1} parent=39 // pred_region
          %s2075 = ssub.s32 512, 512
          %2076 = vsyncadd %s2067, %s2075
          %s2077 = smul.addr %s24, 4
          %s2078 = smul.addr %s2077, 128
          %s2079 = scalar_lea.hbm %s5, %s2078
          %s2080 = sshll.u32 %s2070, 4
          %s2081 = int_to_ptr.vmem [resolvable:$true] %s2080
          %2086 = dma.vmem_to_hbm [thread:$0]  %s2081, 512, %s2079, %s2067, 128, 128, 8
        $region64: #{tpu_custom_call.1} parent=39 // pred_fallthru
          _
      $region40: #{tpu_custom_call.1} parent=5 // pred_fallthru
        _
      %p2087 = scmp.le.s32.totalorder 2, %s19
      // Predicated region
      $region65: #{tpu_custom_call.1} parent=5 // pred_check
        %p2088 = pneg %p2087
      $region66: #{tpu_custom_call.1} parent=5 // pred_check_branch
        %2090 = sbr.rel (%p2088) target = $region68
      $region67: #{tpu_custom_call.1} parent=5 // pred_region
        %s2091 = ssub.s32 %s19, 2
        // Predicated region
        $region69: #{tpu_custom_call.1} parent=67 // pred_check
          %p2092 = pneg %p158
        $region70: #{tpu_custom_call.1} parent=67 // pred_check_branch
          %2094 = sbr.rel (%p2092) target = $region72
        $region71: #{tpu_custom_call.1} parent=67 // pred_region
          %s2095 = sand.u32 %s143, 1
          %s2096 = scalar_lea.sflag [#allocation5], %s2095
          %s2097 = sand.u32 %s143, 1
          %s2098 = smul.addr %s2097, 32
          %s2099 = scalar_lea.vmem [#allocation12], %s2098
          %2100 = dma.done %s2096, 512
        $region72: #{tpu_custom_call.1} parent=67 // pred_fallthru
          _
      $region68: #{tpu_custom_call.1} parent=5 // pred_fallthru
        _
    $region6: #{tpu_custom_call.1} parent=1 // loop_footer
      %s23 = sadd.s32 1, %s19
    $region7: #{tpu_custom_call.1} parent=1 // loop_footer_branch
      %18 = sbr.rel target = $region3
    $region8: #{tpu_custom_call.1} parent=1 // loop_exit
      _
    %2101 = vsyncpa [#allocation4], 1
    %s2102 = scalar_lea.sflag [#allocation4], 1
    %2103 = vsyncpa %s2102, 1
    %2104 = vsyncpa [#allocation7], 1
    %2105 = vsyncpa [#allocation10], 1
    %2106 = vsyncpa [#allocation5], 1
    %s2107 = scalar_lea.sflag [#allocation5], 1
    %2108 = vsyncpa %s2107, 1

</llo_original>
